<compile_context>
chip_gen: v6e
topology: v6e:2x2x1
jax: 0.10.0
libtpu: 0.0.40
codegen_flags: <defaults>
</compile_context>

<pallas_src>
import functools

import jax
import jax.numpy as jnp
from jax import lax
from jax.experimental import pallas as pl
from jax.experimental.pallas import tpu as pltpu


def _round_up(a, m):
    return ((a + m - 1) // m) * m


# ---------------------------------------------------------------------------
# Kernel: one (batch tile, time chunk) grid point.
#   - chunk GI projection (one MXU matmul, off the serial chain)
#   - serial GRU recurrence over the chunk, h carried in VMEM scratch
#   - tanh + linear head on the last chunk
# ---------------------------------------------------------------------------
def gru_disc_kernel(x_ref,      # (Tc, Bt, F)   time-major chunk of this batch tile
                    wih_ref,    # (F, 3*Hp)     input->gates  [r|z|n], per-gate lane-padded
                    whh_ref,    # (Hp, 3*Hp)    hidden->gates [r|z|n]
                    bgi_ref,    # (1, 3*Hp)     b_ih (+ b_hh folded in for r,z gates)
                    bhhn_ref,   # (1, Hp)       b_hh for the n gate only
                    wlin_ref,   # (Hp, Np)      head weight (lane-padded to Np=128)
                    blin_ref,   # (1, Np)
                    out_ref,    # (Bt, Np)      resident across time chunks
                    gi_ref,     # VMEM scratch (Tc, Bt, 3*Hp)
                    h_ref,      # VMEM scratch (Bt, Hp)   hidden-state carry
                    *, seq_len: int, chunk_len: int, needs_mask: bool, unroll: int):
    Tc = chunk_len
    Bt, Hp = h_ref.shape
    F = x_ref.shape[-1]
    c = pl.program_id(1)

    @pl.when(c == 0)
    def _():
        h_ref[...] = jnp.zeros_like(h_ref)

    # ---- GI projection for this chunk: one big MXU matmul, off the serial path.
    # Bt is a sublane-tile multiple, so (Tc,Bt,F) <-> (Tc*Bt,F) reshapes are
    # layout-trivial (no lane/sublane shuffles).
    x2d = x_ref[...].reshape(Tc * Bt, F)
    gi2d = (jnp.dot(x2d, wih_ref[...], preferred_element_type=jnp.float32)
            + bgi_ref[...])
    gi_ref[...] = gi2d.reshape(Tc, Bt, 3 * Hp)
    # TODO(synk): double-buffer gi chunks so chunk c+1's projection overlaps the
    # recurrence on chunk c (manual pipeline / emit_pipeline on the x->gi stage).

    # ---- loop-invariant operands, hoisted (JAX does not CSE broadcasts)
    whh = whh_ref[...]
    bhh_n = jnp.broadcast_to(bhhn_ref[...], (Bt, Hp))

    def step(t, h):
        gi_t = gi_ref[t]                                        # (Bt, 3*Hp), aligned
        gh = jnp.dot(h, whh, preferred_element_type=jnp.float32)  # (Bt, 3*Hp)
        r = jax.nn.sigmoid(gi_t[:, 0:Hp] + gh[:, 0:Hp])
        z = jax.nn.sigmoid(gi_t[:, Hp:2 * Hp] + gh[:, Hp:2 * Hp])
        n = jnp.tanh(gi_t[:, 2 * Hp:] + r * (gh[:, 2 * Hp:] + bhh_n))
        h_new = n + z * (h - n)                                 # == (1-z)*n + z*h
        if needs_mask:                                          # only when T was padded
            h_new = jnp.where(c * Tc + t < seq_len, h_new, h)
        return h_new

    h = h_ref[...]
    if Tc <= 16:
        for t in range(Tc):                # full unroll for short chunks
            h = step(t, h)
    else:
        h = lax.fori_loop(0, Tc, step, h, unroll=unroll)
    h_ref[...] = h

    @pl.when(c == pl.num_programs(1) - 1)
    def _():
        o = jnp.tanh(h)
        out_ref[...] = (jnp.dot(o, wlin_ref[...], preferred_element_type=jnp.float32)
                        + blin_ref[...])


# ---------------------------------------------------------------------------
# Wrapper: layout / padding plumbing + pallas_call.
# ---------------------------------------------------------------------------
def _pad_last(a, width):
    pad = [(0, 0)] * (a.ndim - 1) + [(0, width - a.shape[-1])]
    return jnp.pad(a, pad)


def gru_discriminative(x, params, hidden_dim, *, batch_tile=256,
                       gi_chunk_bytes=16 << 20):
    """x: (B, T, F) float32 (batch_first, like the PyTorch module). Returns (B, 1)."""
    B, T, F = x.shape
    H = hidden_dim
    f32 = jnp.float32

    Hp = max(128, _round_up(H, 128))     # lane-tile-aligned gate width
    Np = 128                             # lane-dense head output width

    # ---- batch tiling toward MXU M-width (grid "parallel" axis)
    n_btiles = max(1, -(-B // batch_tile))
    Bt = _round_up(-(-B // n_btiles), 8)
    Bpad = Bt * n_btiles

    # ---- time chunking so the per-chunk GI slab stays bounded in VMEM
    gi_row_bytes = Bt * 3 * Hp * 4
    Tc = max(1, min(T, gi_chunk_bytes // gi_row_bytes))
    n_chunks = -(-T // Tc)
    Tpad = Tc * n_chunks
    needs_mask = Tpad != T               # padded steps masked inside the kernel

    # x: (B,T,F) -> time-major (Tpad, Bpad, F), zero-padded.
    # TODO(synk): fold this transpose/pad into the kernel (in-VMEM relayout on the
    # batch tile) to save one HBM round-trip on x at large sizes.
    x_tm = jnp.transpose(x, (1, 0, 2)).astype(f32)
    x_tm = jnp.pad(x_tm, ((0, Tpad - T), (0, Bpad - B), (0, 0)))

    wih = jnp.transpose(params["weight_ih"]).astype(f32)   # (F, 3H)
    whh = jnp.transpose(params["weight_hh"]).astype(f32)   # (H, 3H)
    bih = params["bias_ih"].astype(f32)                    # (3H,)
    bhh = params["bias_hh"].astype(f32)                    # (3H,)

    def gate(a, g):
        return a[..., g * H:(g + 1) * H]

    # input->gates weights: per-gate lane padding to Hp -> (F, 3*Hp)
    wih_p = jnp.concatenate([_pad_last(gate(wih, g), Hp) for g in range(3)], axis=-1)
    # hidden->gates weights: per-gate lane padding + row padding -> (Hp, 3*Hp)
    whh_p = jnp.concatenate([_pad_last(gate(whh, g), Hp) for g in range(3)], axis=-1)
    whh_p = jnp.pad(whh_p, ((0, Hp - H), (0, 0)))

    # biases: fold b_hh for r/z gates into the precomputed projection; only the
    # n-gate hidden bias stays inside the recurrence (it sits inside r * (...)).
    b_gi = jnp.concatenate([
        _pad_last((gate(bih, 0) + gate(bhh, 0))[None, :], Hp),
        _pad_last((gate(bih, 1) + gate(bhh, 1))[None, :], Hp),
        _pad_last(gate(bih, 2)[None, :], Hp),
    ], axis=-1)                                             # (1, 3*Hp)
    bhh_n = _pad_last(gate(bhh, 2)[None, :], Hp)            # (1, Hp)

    wlin_p = jnp.pad(jnp.transpose(params["linear_w"]).astype(f32),
                     ((0, Hp - H), (0, Np - 1)))            # (Hp, Np)
    blin_p = jnp.pad(params["linear_b"].reshape(1, 1).astype(f32),
                     ((0, 0), (0, Np - 1)))                 # (1, Np)

    # VMEM budget: double-buffered x tile + resident weights + scratches + out tile.
    vmem_est = (2 * Tc * Bt * F                # x tile (double-buffered)
                + (F + Hp) * 3 * Hp + 4 * Hp   # weights + biases
                + Hp * Np + Np                 # head
                + 2 * Bt * Np                  # out tile
                + Tc * Bt * 3 * Hp + Bt * Hp   # gi + h scratch
                ) * 4
    vmem_limit = int(min(64 << 20, max(2 * vmem_est, 32 << 20)))

    kernel = functools.partial(gru_disc_kernel, seq_len=T, chunk_len=Tc,
                               needs_mask=needs_mask, unroll=8)

    out = pl.pallas_call(
        kernel,
        out_shape=jax.ShapeDtypeStruct((Bpad, Np), f32),
        grid_spec=pltpu.PrefetchScalarGridSpec(
            num_scalar_prefetch=0,
            grid=(n_btiles, n_chunks),
            in_specs=[
                pl.BlockSpec((Tc, Bt, F), lambda i, c: (c, i, 0)),     # x chunk
                pl.BlockSpec((F, 3 * Hp), lambda i, c: (0, 0)),        # W_ih (resident)
                pl.BlockSpec((Hp, 3 * Hp), lambda i, c: (0, 0)),       # W_hh (resident)
                pl.BlockSpec((1, 3 * Hp), lambda i, c: (0, 0)),        # b_gi
                pl.BlockSpec((1, Hp), lambda i, c: (0, 0)),            # b_hh_n
                pl.BlockSpec((Hp, Np), lambda i, c: (0, 0)),           # head W
                pl.BlockSpec((1, Np), lambda i, c: (0, 0)),            # head b
            ],
            out_specs=pl.BlockSpec((Bt, Np), lambda i, c: (i, 0)),     # resident over c
            scratch_shapes=[pltpu.VMEM((Tc, Bt, 3 * Hp), f32),
                            pltpu.VMEM((Bt, Hp), f32)],
        ),
        compiler_params=pltpu.CompilerParams(
            dimension_semantics=("parallel", "arbitrary"),
            vmem_limit_bytes=vmem_limit,
        ),
    )(x_tm, wih_p, whh_p, b_gi, bhh_n, wlin_p, blin_p)

    return out[:B, :1]


# ---------------------------------------------------------------------------
# Pure-JAX reference (mirrors PyTorch nn.GRU semantics) for verification.
# ---------------------------------------------------------------------------
def reference(x, params, hidden_dim):
    B, T, F = x.shape
    H = hidden_dim
    wih = params["weight_ih"]   # (3H, F)
    whh = params["weight_hh"]   # (3H, H)
    bih = params["bias_ih"]
    bhh = params["bias_hh"]

    def step(h, x_t):
        gi = x_t @ wih.T + bih
        gh = h @ whh.T + bhh
        r = jax.nn.sigmoid(gi[:, :H] + gh[:, :H])
        z = jax.nn.sigmoid(gi[:, H:2 * H] + gh[:, H:2 * H])
        n = jnp.tanh(gi[:, 2 * H:] + r * gh[:, 2 * H:])
        h_new = (1.0 - z) * n + z * h
        return h_new, None

    h, _ = lax.scan(step, jnp.zeros((B, H), jnp.float32),
                    jnp.transpose(x, (1, 0, 2)))
    o = jnp.tanh(h)
    return o @ params["linear_w"].T + params["linear_b"]


if __name__ == "__main__":
    # Small shapes consistent with the module's forward: (batch, seq, n_features).
    B, T, F, H = 2, 8, 4, 32

    key = jax.random.PRNGKey(0)
    k = jax.random.split(key, 7)
    bound = 1.0 / jnp.sqrt(H)

    params = {
        "weight_ih": jax.random.uniform(k[0], (3 * H, F), jnp.float32, -bound, bound),
        "weight_hh": jax.random.uniform(k[1], (3 * H, H), jnp.float32, -bound, bound),
        "bias_ih":   jax.random.uniform(k[2], (3 * H,),   jnp.float32, -bound, bound),
        "bias_hh":   jax.random.uniform(k[3], (3 * H,),   jnp.float32, -bound, bound),
        "linear_w":  jax.random.uniform(k[4], (1, H),     jnp.float32, -bound, bound),
        "linear_b":  jax.random.uniform(k[5], (1,),       jnp.float32, -bound, bound),
    }
    x = jax.random.normal(k[6], (B, T, F), jnp.float32)

    out = gru_discriminative(x, params, H)
    out = jax.block_until_ready(out)

    ref = reference(x, params, H)
    assert out.shape == (B, 1)
    assert jnp.allclose(out, ref, atol=2e-5, rtol=1e-4), (out, ref)

    print("KERNEL_OK")
</pallas_src>

<mosaic_0001>
module attributes {stable_mosaic.version = 11 : i64} {
  func.func @gru_disc_kernel(%arg0: i32, %arg1: i32, %arg2: memref<8x8x4xf32, #tpu.memory_space<vmem>>, %arg3: memref<4x384xf32, #tpu.memory_space<vmem>>, %arg4: memref<128x384xf32, #tpu.memory_space<vmem>>, %arg5: memref<1x384xf32, #tpu.memory_space<vmem>>, %arg6: memref<1x128xf32, #tpu.memory_space<vmem>>, %arg7: memref<128x128xf32, #tpu.memory_space<vmem>>, %arg8: memref<1x128xf32, #tpu.memory_space<vmem>>, %arg9: memref<8x128xf32, #tpu.memory_space<vmem>>, %arg10: memref<8x8x384xf32, #tpu.memory_space<vmem>>, %arg11: memref<8x128xf32, #tpu.memory_space<vmem>>) attributes {dimension_semantics = [#tpu.dimension_semantics<parallel>, #tpu.dimension_semantics<arbitrary>], iteration_bounds = array<i64: 1, 1>, scalar_prefetch = 0 : i64, scratch_operands = 2 : i64, tpu.core_type = #tpu.core_type<tc>, window_params = [{transform_indices = @transform_0, window_bounds = array<i64: 8, 8, 4>}, {pipeline_mode = #tpu.pipeline_mode<synchronous>, transform_indices = @transform_1, window_bounds = array<i64: 4, 384>}, {pipeline_mode = #tpu.pipeline_mode<synchronous>, transform_indices = @transform_2, window_bounds = array<i64: 128, 384>}, {pipeline_mode = #tpu.pipeline_mode<synchronous>, transform_indices = @transform_3, window_bounds = array<i64: 1, 384>}, {pipeline_mode = #tpu.pipeline_mode<synchronous>, transform_indices = @transform_4, window_bounds = array<i64: 1, 128>}, {pipeline_mode = #tpu.pipeline_mode<synchronous>, transform_indices = @transform_5, window_bounds = array<i64: 128, 128>}, {pipeline_mode = #tpu.pipeline_mode<synchronous>, transform_indices = @transform_6, window_bounds = array<i64: 1, 128>}, {transform_indices = @transform_7, window_bounds = array<i64: 8, 128>}]} {
    %c0_i32 = arith.constant 0 : i32
    %0 = arith.cmpi eq, %arg1, %c0_i32 : i32
    %1 = arith.extui %0 : i1 to i32
    %c0_i32_0 = arith.constant 0 : i32
    %2 = arith.cmpi ne, %1, %c0_i32_0 : i32
    scf.if %2 {
      %cst_61 = arith.constant 0.000000e+00 : f32
      %245 = vector.broadcast %cst_61 : f32 to vector<8x128xf32>
      %c0_62 = arith.constant 0 : index
      %c0_63 = arith.constant 0 : index
      %246 = vector.load %arg11[%c0_62, %c0_63] : memref<8x128xf32, #tpu.memory_space<vmem>>, vector<8x128xf32>
      tpu.vector_store %arg11[%c0_62, %c0_63], %245 {strides = array<i32>} : memref<8x128xf32, #tpu.memory_space<vmem>>, vector<8x128xf32>,
    } else {
    }
    %c0 = arith.constant 0 : index
    %c0_1 = arith.constant 0 : index
    %c0_2 = arith.constant 0 : index
    %3 = vector.load %arg2[%c0, %c0_1, %c0_2] : memref<8x8x4xf32, #tpu.memory_space<vmem>>, vector<8x8x4xf32>
    %4 = vector.shape_cast %3 : vector<8x8x4xf32> to vector<64x4xf32>
    %c0_3 = arith.constant 0 : index
    %c0_4 = arith.constant 0 : index
    %5 = vector.load %arg3[%c0_3, %c0_4] : memref<4x384xf32, #tpu.memory_space<vmem>>, vector<4x384xf32>
    %cst = arith.constant dense<0.000000e+00> : vector<64x384xf32>
    %6 = tpu.matmul %4, %5, %cst {dimension_numbers = #tpu.dot_dimension_numbers<[1], [0], [0], [1], [0, 0, 1, 1], [], []>} : vector<64x4xf32>, vector<4x384xf32>, vector<64x384xf32> -> vector<64x384xf32>
    %c0_5 = arith.constant 0 : index
    %c0_6 = arith.constant 0 : index
    %7 = vector.load %arg5[%c0_5, %c0_6] : memref<1x384xf32, #tpu.memory_space<vmem>>, vector<1x384xf32>
    %8 = vector.broadcast %7 : vector<1x384xf32> to vector<64x384xf32>
    %9 = arith.addf %6, %8 : vector<64x384xf32>
    %10 = vector.shape_cast %9 : vector<64x384xf32> to vector<8x8x384xf32>
    %c0_7 = arith.constant 0 : index
    %c0_8 = arith.constant 0 : index
    %c0_9 = arith.constant 0 : index
    %11 = vector.load %arg10[%c0_7, %c0_8, %c0_9] : memref<8x8x384xf32, #tpu.memory_space<vmem>>, vector<8x8x384xf32>
    tpu.vector_store %arg10[%c0_7, %c0_8, %c0_9], %10 {strides = array<i32>} : memref<8x8x384xf32, #tpu.memory_space<vmem>>, vector<8x8x384xf32>,
    %c0_10 = arith.constant 0 : index
    %c0_11 = arith.constant 0 : index
    %12 = vector.load %arg4[%c0_10, %c0_11] : memref<128x384xf32, #tpu.memory_space<vmem>>, vector<128x384xf32>
    %c0_12 = arith.constant 0 : index
    %c0_13 = arith.constant 0 : index
    %13 = vector.load %arg6[%c0_12, %c0_13] : memref<1x128xf32, #tpu.memory_space<vmem>>, vector<1x128xf32>
    %14 = vector.shape_cast %13 : vector<1x128xf32> to vector<1x128xf32>
    %15 = vector.broadcast %14 : vector<1x128xf32> to vector<8x128xf32>
    %c0_14 = arith.constant 0 : index
    %c0_15 = arith.constant 0 : index
    %16 = vector.load %arg11[%c0_14, %c0_15] : memref<8x128xf32, #tpu.memory_space<vmem>>, vector<8x128xf32>
    %c0_16 = arith.constant 0 : index
    %c0_17 = arith.constant 0 : index
    %c0_18 = arith.constant 0 : index
    %17 = vector.load %arg10[%c0_16, %c0_17, %c0_18] : memref<8x8x384xf32, #tpu.memory_space<vmem>>, vector<1x8x384xf32>
    %18 = vector.shape_cast %17 : vector<1x8x384xf32> to vector<8x384xf32>
    %cst_19 = arith.constant dense<0.000000e+00> : vector<8x384xf32>
    %19 = tpu.matmul %16, %12, %cst_19 {dimension_numbers = #tpu.dot_dimension_numbers<[1], [0], [0], [1], [0, 0, 1, 1], [], []>} : vector<8x128xf32>, vector<128x384xf32>, vector<8x384xf32> -> vector<8x384xf32>
    %20 = vector.extract_strided_slice %18 {offsets = [0, 0], sizes = [8, 128], strides = [1, 1]} : vector<8x384xf32> to vector<8x128xf32>
    %21 = vector.extract_strided_slice %19 {offsets = [0, 0], sizes = [8, 128], strides = [1, 1]} : vector<8x384xf32> to vector<8x128xf32>
    %22 = arith.addf %20, %21 : vector<8x128xf32>
    %23 = arith.negf %22 : vector<8x128xf32>
    %24 = math.exp %23 : vector<8x128xf32>
    %cst_20 = arith.constant 1.000000e+00 : f32
    %25 = vector.broadcast %cst_20 : f32 to vector<8x128xf32>
    %26 = arith.addf %25, %24 : vector<8x128xf32>
    %27 = arith.divf %25, %26 : vector<8x128xf32>
    %28 = vector.extract_strided_slice %18 {offsets = [0, 128], sizes = [8, 128], strides = [1, 1]} : vector<8x384xf32> to vector<8x128xf32>
    %29 = vector.extract_strided_slice %19 {offsets = [0, 128], sizes = [8, 128], strides = [1, 1]} : vector<8x384xf32> to vector<8x128xf32>
    %30 = arith.addf %28, %29 : vector<8x128xf32>
    %31 = arith.negf %30 : vector<8x128xf32>
    %32 = math.exp %31 : vector<8x128xf32>
    %cst_21 = arith.constant 1.000000e+00 : f32
    %33 = vector.broadcast %cst_21 : f32 to vector<8x128xf32>
    %34 = arith.addf %33, %32 : vector<8x128xf32>
    %35 = arith.divf %33, %34 : vector<8x128xf32>
    %36 = vector.extract_strided_slice %18 {offsets = [0, 256], sizes = [8, 128], strides = [1, 1]} : vector<8x384xf32> to vector<8x128xf32>
    %37 = vector.extract_strided_slice %19 {offsets = [0, 256], sizes = [8, 128], strides = [1, 1]} : vector<8x384xf32> to vector<8x128xf32>
    %38 = arith.addf %37, %15 : vector<8x128xf32>
    %39 = arith.mulf %27, %38 : vector<8x128xf32>
    %40 = arith.addf %36, %39 : vector<8x128xf32>
    %41 = math.tanh %40 : vector<8x128xf32>
    %42 = arith.subf %16, %41 : vector<8x128xf32>
    %43 = arith.mulf %35, %42 : vector<8x128xf32>
    %44 = arith.addf %41, %43 : vector<8x128xf32>
    %c1 = arith.constant 1 : index
    %c0_22 = arith.constant 0 : index
    %c0_23 = arith.constant 0 : index
    %45 = vector.load %arg10[%c1, %c0_22, %c0_23] : memref<8x8x384xf32, #tpu.memory_space<vmem>>, vector<1x8x384xf32>
    %46 = vector.shape_cast %45 : vector<1x8x384xf32> to vector<8x384xf32>
    %cst_24 = arith.constant dense<0.000000e+00> : vector<8x384xf32>
    %47 = tpu.matmul %44, %12, %cst_24 {dimension_numbers = #tpu.dot_dimension_numbers<[1], [0], [0], [1], [0, 0, 1, 1], [], []>} : vector<8x128xf32>, vector<128x384xf32>, vector<8x384xf32> -> vector<8x384xf32>
    %48 = vector.extract_strided_slice %46 {offsets = [0, 0], sizes = [8, 128], strides = [1, 1]} : vector<8x384xf32> to vector<8x128xf32>
    %49 = vector.extract_strided_slice %47 {offsets = [0, 0], sizes = [8, 128], strides = [1, 1]} : vector<8x384xf32> to vector<8x128xf32>
    %50 = arith.addf %48, %49 : vector<8x128xf32>
    %51 = arith.negf %50 : vector<8x128xf32>
    %52 = math.exp %51 : vector<8x128xf32>
    %cst_25 = arith.constant 1.000000e+00 : f32
    %53 = vector.broadcast %cst_25 : f32 to vector<8x128xf32>
    %54 = arith.addf %53, %52 : vector<8x128xf32>
    %55 = arith.divf %53, %54 : vector<8x128xf32>
    %56 = vector.extract_strided_slice %46 {offsets = [0, 128], sizes = [8, 128], strides = [1, 1]} : vector<8x384xf32> to vector<8x128xf32>
    %57 = vector.extract_strided_slice %47 {offsets = [0, 128], sizes = [8, 128], strides = [1, 1]} : vector<8x384xf32> to vector<8x128xf32>
    %58 = arith.addf %56, %57 : vector<8x128xf32>
    %59 = arith.negf %58 : vector<8x128xf32>
    %60 = math.exp %59 : vector<8x128xf32>
    %cst_26 = arith.constant 1.000000e+00 : f32
    %61 = vector.broadcast %cst_26 : f32 to vector<8x128xf32>
    %62 = arith.addf %61, %60 : vector<8x128xf32>
    %63 = arith.divf %61, %62 : vector<8x128xf32>
    %64 = vector.extract_strided_slice %46 {offsets = [0, 256], sizes = [8, 128], strides = [1, 1]} : vector<8x384xf32> to vector<8x128xf32>
    %65 = vector.extract_strided_slice %47 {offsets = [0, 256], sizes = [8, 128], strides = [1, 1]} : vector<8x384xf32> to vector<8x128xf32>
    %66 = arith.addf %65, %15 : vector<8x128xf32>
    %67 = arith.mulf %55, %66 : vector<8x128xf32>
    %68 = arith.addf %64, %67 : vector<8x128xf32>
    %69 = math.tanh %68 : vector<8x128xf32>
    %70 = arith.subf %44, %69 : vector<8x128xf32>
    %71 = arith.mulf %63, %70 : vector<8x128xf32>
    %72 = arith.addf %69, %71 : vector<8x128xf32>
    %c2 = arith.constant 2 : index
    %c0_27 = arith.constant 0 : index
    %c0_28 = arith.constant 0 : index
    %73 = vector.load %arg10[%c2, %c0_27, %c0_28] : memref<8x8x384xf32, #tpu.memory_space<vmem>>, vector<1x8x384xf32>
    %74 = vector.shape_cast %73 : vector<1x8x384xf32> to vector<8x384xf32>
    %cst_29 = arith.constant dense<0.000000e+00> : vector<8x384xf32>
    %75 = tpu.matmul %72, %12, %cst_29 {dimension_numbers = #tpu.dot_dimension_numbers<[1], [0], [0], [1], [0, 0, 1, 1], [], []>} : vector<8x128xf32>, vector<128x384xf32>, vector<8x384xf32> -> vector<8x384xf32>
    %76 = vector.extract_strided_slice %74 {offsets = [0, 0], sizes = [8, 128], strides = [1, 1]} : vector<8x384xf32> to vector<8x128xf32>
    %77 = vector.extract_strided_slice %75 {offsets = [0, 0], sizes = [8, 128], strides = [1, 1]} : vector<8x384xf32> to vector<8x128xf32>
    %78 = arith.addf %76, %77 : vector<8x128xf32>
    %79 = arith.negf %78 : vector<8x128xf32>
    %80 = math.exp %79 : vector<8x128xf32>
    %cst_30 = arith.constant 1.000000e+00 : f32
    %81 = vector.broadcast %cst_30 : f32 to vector<8x128xf32>
    %82 = arith.addf %81, %80 : vector<8x128xf32>
    %83 = arith.divf %81, %82 : vector<8x128xf32>
    %84 = vector.extract_strided_slice %74 {offsets = [0, 128], sizes = [8, 128], strides = [1, 1]} : vector<8x384xf32> to vector<8x128xf32>
    %85 = vector.extract_strided_slice %75 {offsets = [0, 128], sizes = [8, 128], strides = [1, 1]} : vector<8x384xf32> to vector<8x128xf32>
    %86 = arith.addf %84, %85 : vector<8x128xf32>
    %87 = arith.negf %86 : vector<8x128xf32>
    %88 = math.exp %87 : vector<8x128xf32>
    %cst_31 = arith.constant 1.000000e+00 : f32
    %89 = vector.broadcast %cst_31 : f32 to vector<8x128xf32>
    %90 = arith.addf %89, %88 : vector<8x128xf32>
    %91 = arith.divf %89, %90 : vector<8x128xf32>
    %92 = vector.extract_strided_slice %74 {offsets = [0, 256], sizes = [8, 128], strides = [1, 1]} : vector<8x384xf32> to vector<8x128xf32>
    %93 = vector.extract_strided_slice %75 {offsets = [0, 256], sizes = [8, 128], strides = [1, 1]} : vector<8x384xf32> to vector<8x128xf32>
    %94 = arith.addf %93, %15 : vector<8x128xf32>
    %95 = arith.mulf %83, %94 : vector<8x128xf32>
    %96 = arith.addf %92, %95 : vector<8x128xf32>
    %97 = math.tanh %96 : vector<8x128xf32>
    %98 = arith.subf %72, %97 : vector<8x128xf32>
    %99 = arith.mulf %91, %98 : vector<8x128xf32>
    %100 = arith.addf %97, %99 : vector<8x128xf32>
    %c3 = arith.constant 3 : index
    %c0_32 = arith.constant 0 : index
    %c0_33 = arith.constant 0 : index
    %101 = vector.load %arg10[%c3, %c0_32, %c0_33] : memref<8x8x384xf32, #tpu.memory_space<vmem>>, vector<1x8x384xf32>
    %102 = vector.shape_cast %101 : vector<1x8x384xf32> to vector<8x384xf32>
    %cst_34 = arith.constant dense<0.000000e+00> : vector<8x384xf32>
    %103 = tpu.matmul %100, %12, %cst_34 {dimension_numbers = #tpu.dot_dimension_numbers<[1], [0], [0], [1], [0, 0, 1, 1], [], []>} : vector<8x128xf32>, vector<128x384xf32>, vector<8x384xf32> -> vector<8x384xf32>
    %104 = vector.extract_strided_slice %102 {offsets = [0, 0], sizes = [8, 128], strides = [1, 1]} : vector<8x384xf32> to vector<8x128xf32>
    %105 = vector.extract_strided_slice %103 {offsets = [0, 0], sizes = [8, 128], strides = [1, 1]} : vector<8x384xf32> to vector<8x128xf32>
    %106 = arith.addf %104, %105 : vector<8x128xf32>
    %107 = arith.negf %106 : vector<8x128xf32>
    %108 = math.exp %107 : vector<8x128xf32>
    %cst_35 = arith.constant 1.000000e+00 : f32
    %109 = vector.broadcast %cst_35 : f32 to vector<8x128xf32>
    %110 = arith.addf %109, %108 : vector<8x128xf32>
    %111 = arith.divf %109, %110 : vector<8x128xf32>
    %112 = vector.extract_strided_slice %102 {offsets = [0, 128], sizes = [8, 128], strides = [1, 1]} : vector<8x384xf32> to vector<8x128xf32>
    %113 = vector.extract_strided_slice %103 {offsets = [0, 128], sizes = [8, 128], strides = [1, 1]} : vector<8x384xf32> to vector<8x128xf32>
    %114 = arith.addf %112, %113 : vector<8x128xf32>
    %115 = arith.negf %114 : vector<8x128xf32>
    %116 = math.exp %115 : vector<8x128xf32>
    %cst_36 = arith.constant 1.000000e+00 : f32
    %117 = vector.broadcast %cst_36 : f32 to vector<8x128xf32>
    %118 = arith.addf %117, %116 : vector<8x128xf32>
    %119 = arith.divf %117, %118 : vector<8x128xf32>
    %120 = vector.extract_strided_slice %102 {offsets = [0, 256], sizes = [8, 128], strides = [1, 1]} : vector<8x384xf32> to vector<8x128xf32>
    %121 = vector.extract_strided_slice %103 {offsets = [0, 256], sizes = [8, 128], strides = [1, 1]} : vector<8x384xf32> to vector<8x128xf32>
    %122 = arith.addf %121, %15 : vector<8x128xf32>
    %123 = arith.mulf %111, %122 : vector<8x128xf32>
    %124 = arith.addf %120, %123 : vector<8x128xf32>
    %125 = math.tanh %124 : vector<8x128xf32>
    %126 = arith.subf %100, %125 : vector<8x128xf32>
    %127 = arith.mulf %119, %126 : vector<8x128xf32>
    %128 = arith.addf %125, %127 : vector<8x128xf32>
    %c4 = arith.constant 4 : index
    %c0_37 = arith.constant 0 : index
    %c0_38 = arith.constant 0 : index
    %129 = vector.load %arg10[%c4, %c0_37, %c0_38] : memref<8x8x384xf32, #tpu.memory_space<vmem>>, vector<1x8x384xf32>
    %130 = vector.shape_cast %129 : vector<1x8x384xf32> to vector<8x384xf32>
    %cst_39 = arith.constant dense<0.000000e+00> : vector<8x384xf32>
    %131 = tpu.matmul %128, %12, %cst_39 {dimension_numbers = #tpu.dot_dimension_numbers<[1], [0], [0], [1], [0, 0, 1, 1], [], []>} : vector<8x128xf32>, vector<128x384xf32>, vector<8x384xf32> -> vector<8x384xf32>
    %132 = vector.extract_strided_slice %130 {offsets = [0, 0], sizes = [8, 128], strides = [1, 1]} : vector<8x384xf32> to vector<8x128xf32>
    %133 = vector.extract_strided_slice %131 {offsets = [0, 0], sizes = [8, 128], strides = [1, 1]} : vector<8x384xf32> to vector<8x128xf32>
    %134 = arith.addf %132, %133 : vector<8x128xf32>
    %135 = arith.negf %134 : vector<8x128xf32>
    %136 = math.exp %135 : vector<8x128xf32>
    %cst_40 = arith.constant 1.000000e+00 : f32
    %137 = vector.broadcast %cst_40 : f32 to vector<8x128xf32>
    %138 = arith.addf %137, %136 : vector<8x128xf32>
    %139 = arith.divf %137, %138 : vector<8x128xf32>
    %140 = vector.extract_strided_slice %130 {offsets = [0, 128], sizes = [8, 128], strides = [1, 1]} : vector<8x384xf32> to vector<8x128xf32>
    %141 = vector.extract_strided_slice %131 {offsets = [0, 128], sizes = [8, 128], strides = [1, 1]} : vector<8x384xf32> to vector<8x128xf32>
    %142 = arith.addf %140, %141 : vector<8x128xf32>
    %143 = arith.negf %142 : vector<8x128xf32>
    %144 = math.exp %143 : vector<8x128xf32>
    %cst_41 = arith.constant 1.000000e+00 : f32
    %145 = vector.broadcast %cst_41 : f32 to vector<8x128xf32>
    %146 = arith.addf %145, %144 : vector<8x128xf32>
    %147 = arith.divf %145, %146 : vector<8x128xf32>
    %148 = vector.extract_strided_slice %130 {offsets = [0, 256], sizes = [8, 128], strides = [1, 1]} : vector<8x384xf32> to vector<8x128xf32>
    %149 = vector.extract_strided_slice %131 {offsets = [0, 256], sizes = [8, 128], strides = [1, 1]} : vector<8x384xf32> to vector<8x128xf32>
    %150 = arith.addf %149, %15 : vector<8x128xf32>
    %151 = arith.mulf %139, %150 : vector<8x128xf32>
    %152 = arith.addf %148, %151 : vector<8x128xf32>
    %153 = math.tanh %152 : vector<8x128xf32>
    %154 = arith.subf %128, %153 : vector<8x128xf32>
    %155 = arith.mulf %147, %154 : vector<8x128xf32>
    %156 = arith.addf %153, %155 : vector<8x128xf32>
    %c5 = arith.constant 5 : index
    %c0_42 = arith.constant 0 : index
    %c0_43 = arith.constant 0 : index
    %157 = vector.load %arg10[%c5, %c0_42, %c0_43] : memref<8x8x384xf32, #tpu.memory_space<vmem>>, vector<1x8x384xf32>
    %158 = vector.shape_cast %157 : vector<1x8x384xf32> to vector<8x384xf32>
    %cst_44 = arith.constant dense<0.000000e+00> : vector<8x384xf32>
    %159 = tpu.matmul %156, %12, %cst_44 {dimension_numbers = #tpu.dot_dimension_numbers<[1], [0], [0], [1], [0, 0, 1, 1], [], []>} : vector<8x128xf32>, vector<128x384xf32>, vector<8x384xf32> -> vector<8x384xf32>
    %160 = vector.extract_strided_slice %158 {offsets = [0, 0], sizes = [8, 128], strides = [1, 1]} : vector<8x384xf32> to vector<8x128xf32>
    %161 = vector.extract_strided_slice %159 {offsets = [0, 0], sizes = [8, 128], strides = [1, 1]} : vector<8x384xf32> to vector<8x128xf32>
    %162 = arith.addf %160, %161 : vector<8x128xf32>
    %163 = arith.negf %162 : vector<8x128xf32>
    %164 = math.exp %163 : vector<8x128xf32>
    %cst_45 = arith.constant 1.000000e+00 : f32
    %165 = vector.broadcast %cst_45 : f32 to vector<8x128xf32>
    %166 = arith.addf %165, %164 : vector<8x128xf32>
    %167 = arith.divf %165, %166 : vector<8x128xf32>
    %168 = vector.extract_strided_slice %158 {offsets = [0, 128], sizes = [8, 128], strides = [1, 1]} : vector<8x384xf32> to vector<8x128xf32>
    %169 = vector.extract_strided_slice %159 {offsets = [0, 128], sizes = [8, 128], strides = [1, 1]} : vector<8x384xf32> to vector<8x128xf32>
    %170 = arith.addf %168, %169 : vector<8x128xf32>
    %171 = arith.negf %170 : vector<8x128xf32>
    %172 = math.exp %171 : vector<8x128xf32>
    %cst_46 = arith.constant 1.000000e+00 : f32
    %173 = vector.broadcast %cst_46 : f32 to vector<8x128xf32>
    %174 = arith.addf %173, %172 : vector<8x128xf32>
    %175 = arith.divf %173, %174 : vector<8x128xf32>
    %176 = vector.extract_strided_slice %158 {offsets = [0, 256], sizes = [8, 128], strides = [1, 1]} : vector<8x384xf32> to vector<8x128xf32>
    %177 = vector.extract_strided_slice %159 {offsets = [0, 256], sizes = [8, 128], strides = [1, 1]} : vector<8x384xf32> to vector<8x128xf32>
    %178 = arith.addf %177, %15 : vector<8x128xf32>
    %179 = arith.mulf %167, %178 : vector<8x128xf32>
    %180 = arith.addf %176, %179 : vector<8x128xf32>
    %181 = math.tanh %180 : vector<8x128xf32>
    %182 = arith.subf %156, %181 : vector<8x128xf32>
    %183 = arith.mulf %175, %182 : vector<8x128xf32>
    %184 = arith.addf %181, %183 : vector<8x128xf32>
    %c6 = arith.constant 6 : index
    %c0_47 = arith.constant 0 : index
    %c0_48 = arith.constant 0 : index
    %185 = vector.load %arg10[%c6, %c0_47, %c0_48] : memref<8x8x384xf32, #tpu.memory_space<vmem>>, vector<1x8x384xf32>
    %186 = vector.shape_cast %185 : vector<1x8x384xf32> to vector<8x384xf32>
    %cst_49 = arith.constant dense<0.000000e+00> : vector<8x384xf32>
    %187 = tpu.matmul %184, %12, %cst_49 {dimension_numbers = #tpu.dot_dimension_numbers<[1], [0], [0], [1], [0, 0, 1, 1], [], []>} : vector<8x128xf32>, vector<128x384xf32>, vector<8x384xf32> -> vector<8x384xf32>
    %188 = vector.extract_strided_slice %186 {offsets = [0, 0], sizes = [8, 128], strides = [1, 1]} : vector<8x384xf32> to vector<8x128xf32>
    %189 = vector.extract_strided_slice %187 {offsets = [0, 0], sizes = [8, 128], strides = [1, 1]} : vector<8x384xf32> to vector<8x128xf32>
    %190 = arith.addf %188, %189 : vector<8x128xf32>
    %191 = arith.negf %190 : vector<8x128xf32>
    %192 = math.exp %191 : vector<8x128xf32>
    %cst_50 = arith.constant 1.000000e+00 : f32
    %193 = vector.broadcast %cst_50 : f32 to vector<8x128xf32>
    %194 = arith.addf %193, %192 : vector<8x128xf32>
    %195 = arith.divf %193, %194 : vector<8x128xf32>
    %196 = vector.extract_strided_slice %186 {offsets = [0, 128], sizes = [8, 128], strides = [1, 1]} : vector<8x384xf32> to vector<8x128xf32>
    %197 = vector.extract_strided_slice %187 {offsets = [0, 128], sizes = [8, 128], strides = [1, 1]} : vector<8x384xf32> to vector<8x128xf32>
    %198 = arith.addf %196, %197 : vector<8x128xf32>
    %199 = arith.negf %198 : vector<8x128xf32>
    %200 = math.exp %199 : vector<8x128xf32>
    %cst_51 = arith.constant 1.000000e+00 : f32
    %201 = vector.broadcast %cst_51 : f32 to vector<8x128xf32>
    %202 = arith.addf %201, %200 : vector<8x128xf32>
    %203 = arith.divf %201, %202 : vector<8x128xf32>
    %204 = vector.extract_strided_slice %186 {offsets = [0, 256], sizes = [8, 128], strides = [1, 1]} : vector<8x384xf32> to vector<8x128xf32>
    %205 = vector.extract_strided_slice %187 {offsets = [0, 256], sizes = [8, 128], strides = [1, 1]} : vector<8x384xf32> to vector<8x128xf32>
    %206 = arith.addf %205, %15 : vector<8x128xf32>
    %207 = arith.mulf %195, %206 : vector<8x128xf32>
    %208 = arith.addf %204, %207 : vector<8x128xf32>
    %209 = math.tanh %208 : vector<8x128xf32>
    %210 = arith.subf %184, %209 : vector<8x128xf32>
    %211 = arith.mulf %203, %210 : vector<8x128xf32>
    %212 = arith.addf %209, %211 : vector<8x128xf32>
    %c7 = arith.constant 7 : index
    %c0_52 = arith.constant 0 : index
    %c0_53 = arith.constant 0 : index
    %213 = vector.load %arg10[%c7, %c0_52, %c0_53] : memref<8x8x384xf32, #tpu.memory_space<vmem>>, vector<1x8x384xf32>
    %214 = vector.shape_cast %213 : vector<1x8x384xf32> to vector<8x384xf32>
    %cst_54 = arith.constant dense<0.000000e+00> : vector<8x384xf32>
    %215 = tpu.matmul %212, %12, %cst_54 {dimension_numbers = #tpu.dot_dimension_numbers<[1], [0], [0], [1], [0, 0, 1, 1], [], []>} : vector<8x128xf32>, vector<128x384xf32>, vector<8x384xf32> -> vector<8x384xf32>
    %216 = vector.extract_strided_slice %214 {offsets = [0, 0], sizes = [8, 128], strides = [1, 1]} : vector<8x384xf32> to vector<8x128xf32>
    %217 = vector.extract_strided_slice %215 {offsets = [0, 0], sizes = [8, 128], strides = [1, 1]} : vector<8x384xf32> to vector<8x128xf32>
    %218 = arith.addf %216, %217 : vector<8x128xf32>
    %219 = arith.negf %218 : vector<8x128xf32>
    %220 = math.exp %219 : vector<8x128xf32>
    %cst_55 = arith.constant 1.000000e+00 : f32
    %221 = vector.broadcast %cst_55 : f32 to vector<8x128xf32>
    %222 = arith.addf %221, %220 : vector<8x128xf32>
    %223 = arith.divf %221, %222 : vector<8x128xf32>
    %224 = vector.extract_strided_slice %214 {offsets = [0, 128], sizes = [8, 128], strides = [1, 1]} : vector<8x384xf32> to vector<8x128xf32>
    %225 = vector.extract_strided_slice %215 {offsets = [0, 128], sizes = [8, 128], strides = [1, 1]} : vector<8x384xf32> to vector<8x128xf32>
    %226 = arith.addf %224, %225 : vector<8x128xf32>
    %227 = arith.negf %226 : vector<8x128xf32>
    %228 = math.exp %227 : vector<8x128xf32>
    %cst_56 = arith.constant 1.000000e+00 : f32
    %229 = vector.broadcast %cst_56 : f32 to vector<8x128xf32>
    %230 = arith.addf %229, %228 : vector<8x128xf32>
    %231 = arith.divf %229, %230 : vector<8x128xf32>
    %232 = vector.extract_strided_slice %214 {offsets = [0, 256], sizes = [8, 128], strides = [1, 1]} : vector<8x384xf32> to vector<8x128xf32>
    %233 = vector.extract_strided_slice %215 {offsets = [0, 256], sizes = [8, 128], strides = [1, 1]} : vector<8x384xf32> to vector<8x128xf32>
    %234 = arith.addf %233, %15 : vector<8x128xf32>
    %235 = arith.mulf %223, %234 : vector<8x128xf32>
    %236 = arith.addf %232, %235 : vector<8x128xf32>
    %237 = math.tanh %236 : vector<8x128xf32>
    %238 = arith.subf %212, %237 : vector<8x128xf32>
    %239 = arith.mulf %231, %238 : vector<8x128xf32>
    %240 = arith.addf %237, %239 : vector<8x128xf32>
    %c0_57 = arith.constant 0 : index
    %c0_58 = arith.constant 0 : index
    %241 = vector.load %arg11[%c0_57, %c0_58] : memref<8x128xf32, #tpu.memory_space<vmem>>, vector<8x128xf32>
    tpu.vector_store %arg11[%c0_57, %c0_58], %240 {strides = array<i32>} : memref<8x128xf32, #tpu.memory_space<vmem>>, vector<8x128xf32>,
    %c0_i32_59 = arith.constant 0 : i32
    %242 = arith.cmpi eq, %arg1, %c0_i32_59 : i32
    %243 = arith.extui %242 : i1 to i32
    %c0_i32_60 = arith.constant 0 : i32
    %244 = arith.cmpi ne, %243, %c0_i32_60 : i32
    scf.if %244 {
      %245 = math.tanh %240 : vector<8x128xf32>
      %c0_61 = arith.constant 0 : index
      %c0_62 = arith.constant 0 : index
      %246 = vector.load %arg7[%c0_61, %c0_62] : memref<128x128xf32, #tpu.memory_space<vmem>>, vector<128x128xf32>
      %cst_63 = arith.constant dense<0.000000e+00> : vector<8x128xf32>
      %247 = tpu.matmul %245, %246, %cst_63 {dimension_numbers = #tpu.dot_dimension_numbers<[1], [0], [0], [1], [0, 0, 1, 1], [], []>} : vector<8x128xf32>, vector<128x128xf32>, vector<8x128xf32> -> vector<8x128xf32>
      %c0_64 = arith.constant 0 : index
      %c0_65 = arith.constant 0 : index
      %248 = vector.load %arg8[%c0_64, %c0_65] : memref<1x128xf32, #tpu.memory_space<vmem>>, vector<1x128xf32>
      %249 = vector.broadcast %248 : vector<1x128xf32> to vector<8x128xf32>
      %250 = arith.addf %247, %249 : vector<8x128xf32>
      %c0_66 = arith.constant 0 : index
      %c0_67 = arith.constant 0 : index
      %251 = vector.load %arg9[%c0_66, %c0_67] : memref<8x128xf32, #tpu.memory_space<vmem>>, vector<8x128xf32>
      tpu.vector_store %arg9[%c0_66, %c0_67], %250 {strides = array<i32>} : memref<8x128xf32, #tpu.memory_space<vmem>>, vector<8x128xf32>,
    } else {
    }
    return
  }
  func.func @transform_0(%arg0: i32, %arg1: i32) -> (i32, i32, i32) {
    %c0_i32 = arith.constant 0 : i32
    %c0_i32_0 = arith.constant 0 : i32
    return %arg1, %arg0, %c0_i32 : i32, i32, i32
  }
  func.func @transform_1(%arg0: i32, %arg1: i32) -> (i32, i32) {
    %c0_i32 = arith.constant 0 : i32
    %c0_i32_0 = arith.constant 0 : i32
    %c0_i32_1 = arith.constant 0 : i32
    return %c0_i32, %c0_i32_0 : i32, i32
  }
  func.func @transform_2(%arg0: i32, %arg1: i32) -> (i32, i32) {
    %c0_i32 = arith.constant 0 : i32
    %c0_i32_0 = arith.constant 0 : i32
    %c0_i32_1 = arith.constant 0 : i32
    return %c0_i32, %c0_i32_0 : i32, i32
  }
  func.func @transform_3(%arg0: i32, %arg1: i32) -> (i32, i32) {
    %c0_i32 = arith.constant 0 : i32
    %c0_i32_0 = arith.constant 0 : i32
    %c0_i32_1 = arith.constant 0 : i32
    return %c0_i32, %c0_i32_0 : i32, i32
  }
  func.func @transform_4(%arg0: i32, %arg1: i32) -> (i32, i32) {
    %c0_i32 = arith.constant 0 : i32
    %c0_i32_0 = arith.constant 0 : i32
    %c0_i32_1 = arith.constant 0 : i32
    return %c0_i32, %c0_i32_0 : i32, i32
  }
  func.func @transform_5(%arg0: i32, %arg1: i32) -> (i32, i32) {
    %c0_i32 = arith.constant 0 : i32
    %c0_i32_0 = arith.constant 0 : i32
    %c0_i32_1 = arith.constant 0 : i32
    return %c0_i32, %c0_i32_0 : i32, i32
  }
  func.func @transform_6(%arg0: i32, %arg1: i32) -> (i32, i32) {
    %c0_i32 = arith.constant 0 : i32
    %c0_i32_0 = arith.constant 0 : i32
    %c0_i32_1 = arith.constant 0 : i32
    return %c0_i32, %c0_i32_0 : i32, i32
  }
  func.func @transform_7(%arg0: i32, %arg1: i32) -> (i32, i32) {
    %c0_i32 = arith.constant 0 : i32
    %c0_i32_0 = arith.constant 0 : i32
    return %arg0, %c0_i32 : i32, i32
  }
}

</mosaic_0001>

<llo_original>
// kernel: tpu_custom_call.1
$region0: #{tpu_custom_call.1}
  #allocation0 [shape = 'u32[]', space=smem, size = 0x4, offset = 0x4, fixed_abs, tag = 'smem constant byte address 0x4 - core index']
  #allocation1 [shape = 'u32[144,128]{1,0:T(1,128)}', space=vmem, size = 0x12000, scoped, tag = 'internal scratch']
  #allocation2 [shape = 'f32[8,8,384]{2,1,0:T(8,128)}', space=vmem, size = 0x18000, scoped, tag = 'scratch operand']
  #allocation3 [shape = 'f32[8,128]{1,0:T(8,128)}', space=vmem, size = 0x1000, scoped, tag = 'scratch operand']
  %s0 = inlined_call_operand.vmem [shape: f32[8,8,4], index: 0, kind: input, shape index: {}]
  %s1 = inlined_call_operand.vmem [shape: f32[4,384], index: 1, kind: input, shape index: {}]
  %s2 = inlined_call_operand.hbm [shape: f32[128,384], index: 2, kind: input, shape index: {}]
  %s3 = inlined_call_operand.vmem [shape: f32[1,384], index: 3, kind: input, shape index: {}]
  %s4 = inlined_call_operand.vmem [shape: f32[1,128], index: 4, kind: input, shape index: {}]
  %s5 = inlined_call_operand.hbm [shape: f32[128,128], index: 5, kind: input, shape index: {}]
  %s6 = inlined_call_operand.vmem [shape: f32[1,128], index: 6, kind: input, shape index: {}]
  %s7 = inlined_call_operand.hbm [shape: f32[8,128], index: 7, kind: output, shape index: {}]
  %s8 = sld [smem:[#allocation0]]
  $region54: #{tpu_custom_call.1} parent=0
    _
  %s10 = ssub.s32 1, %s8
  %s11 = scalar_select 0, %s10, %s8
  $region1: #{tpu_custom_call.1} parent=0
    #allocation4 [shape = 'u8[196608]{0}', space=vmem, size = 0x30000, scoped, tag = 'input window, operand 2, single buffered']
    #allocation5 [shape = 's32[1]{0}', space=sflag, size = 0x4, scoped, tag = 'scoped memory for tpu_custom_call.1']
    #allocation6 [shape = 's32[1]{0}', space=sflag, size = 0x4, scoped, tag = 'scoped memory for tpu_custom_call.1']
    #allocation7 [shape = 'u8[65536]{0}', space=vmem, size = 0x10000, scoped, tag = 'input window, operand 5, single buffered']
    #allocation8 [shape = 's32[1]{0}', space=sflag, size = 0x4, scoped, tag = 'scoped memory for tpu_custom_call.1']
    #allocation9 [shape = 'u8[4096]{0}', space=vmem, size = 0x1000, scoped, tag = 'output window, operand 0, single buffered']
    %12 = vsyncpa [#allocation5], 0
    %13 = vsyncpa [#allocation8], 0
    %14 = vsyncpa [#allocation6], 0
    // Predicated region
    $region2: #{tpu_custom_call.1} parent=1 // pred_check
      _
    $region3: #{tpu_custom_call.1} parent=1 // pred_check_branch
      %16 = sbr.rel (0) target = $region5
    $region4: #{tpu_custom_call.1} parent=1 // pred_region
      _
    $region5: #{tpu_custom_call.1} parent=1 // pred_fallthru
      _
    // Predicated region
    $region6: #{tpu_custom_call.1} parent=1 // pred_check
      _
    $region7: #{tpu_custom_call.1} parent=1 // pred_check_branch
      %18 = sbr.rel (0) target = $region9
    $region8: #{tpu_custom_call.1} parent=1 // pred_region
      _
    $region9: #{tpu_custom_call.1} parent=1 // pred_fallthru
      _
    // Predicated region
    $region10: #{tpu_custom_call.1} parent=1 // pred_check
      _
    $region11: #{tpu_custom_call.1} parent=1 // pred_check_branch
      %20 = sbr.rel (0) target = $region13
    $region12: #{tpu_custom_call.1} parent=1 // pred_region
      %s22 = ssub.s32 6144, 6144
      %23 = vsyncadd [#allocation5], %s22
      %s24 = sshll.u32 [#allocation4], 4
      %s25 = int_to_ptr.vmem [resolvable:$true] %s24
      %30 = dma.hbm_to_vmem [thread:$0]  %s2, 6144, %s25, [#allocation5], 384, 384, 24
    $region13: #{tpu_custom_call.1} parent=1 // pred_fallthru
      _
    // Predicated region
    $region14: #{tpu_custom_call.1} parent=1 // pred_check
      _
    $region15: #{tpu_custom_call.1} parent=1 // pred_check_branch
      %32 = sbr.rel (0) target = $region17
    $region16: #{tpu_custom_call.1} parent=1 // pred_region
      _
    $region17: #{tpu_custom_call.1} parent=1 // pred_fallthru
      _
    // Predicated region
    $region18: #{tpu_custom_call.1} parent=1 // pred_check
      _
    $region19: #{tpu_custom_call.1} parent=1 // pred_check_branch
      %34 = sbr.rel (0) target = $region21
    $region20: #{tpu_custom_call.1} parent=1 // pred_region
      _
    $region21: #{tpu_custom_call.1} parent=1 // pred_fallthru
      _
    // Predicated region
    $region22: #{tpu_custom_call.1} parent=1 // pred_check
      _
    $region23: #{tpu_custom_call.1} parent=1 // pred_check_branch
      %36 = sbr.rel (0) target = $region25
    $region24: #{tpu_custom_call.1} parent=1 // pred_region
      %s38 = ssub.s32 2048, 2048
      %39 = vsyncadd [#allocation8], %s38
      %s40 = sshll.u32 [#allocation7], 4
      %s41 = int_to_ptr.vmem [resolvable:$true] %s40
      %46 = dma.hbm_to_vmem [thread:$0]  %s5, 2048, %s41, [#allocation8], 128, 128, 8
    $region25: #{tpu_custom_call.1} parent=1 // pred_fallthru
      _
    // Predicated region
    $region26: #{tpu_custom_call.1} parent=1 // pred_check
      _
    $region27: #{tpu_custom_call.1} parent=1 // pred_check_branch
      %48 = sbr.rel (0) target = $region29
    $region28: #{tpu_custom_call.1} parent=1 // pred_region
      _
    $region29: #{tpu_custom_call.1} parent=1 // pred_fallthru
      _
    // Predicated region
    $region30: #{tpu_custom_call.1} parent=1 // pred_check
      _
    $region31: #{tpu_custom_call.1} parent=1 // pred_check_branch
      %50 = sbr.rel (0) target = $region33
    $region32: #{tpu_custom_call.1} parent=1 // pred_region
      %51 = dma.done [#allocation5], 6144
    $region33: #{tpu_custom_call.1} parent=1 // pred_fallthru
      _
    // Predicated region
    $region34: #{tpu_custom_call.1} parent=1 // pred_check
      _
    $region35: #{tpu_custom_call.1} parent=1 // pred_check_branch
      %53 = sbr.rel (0) target = $region37
    $region36: #{tpu_custom_call.1} parent=1 // pred_region
      %54 = dma.done [#allocation8], 2048
    $region37: #{tpu_custom_call.1} parent=1 // pred_fallthru
      _
    %p55 = scmp.eq.s32.totalorder 0, 0
    // Predicated region
    $region38: #{tpu_custom_call.1} parent=1 // pred_check
      %p56 = pneg %p55
    $region39: #{tpu_custom_call.1} parent=1 // pred_check_branch
      %58 = sbr.rel (%p56) target = $region41
    $region40: #{tpu_custom_call.1} parent=1 // pred_region
      %59 = vst [vmem:[#allocation3] sm:$0xff] 0.0
    $region41: #{tpu_custom_call.1} parent=1 // pred_fallthru
      _
    %v60 = vld [vmem:[%s0] sm:$0xff]
    %v61 = vld [vmem:[%s0 + $0x8] sm:$0xff]
    %v62 = vld [vmem:[%s0 + $0x10] sm:$0xff]
    %v63 = vld [vmem:[%s0 + $0x18] sm:$0xff]
    %v64 = vld [vmem:[%s0 + $0x20] sm:$0xff]
    %v65 = vld [vmem:[%s0 + $0x28] sm:$0xff]
    %v66 = vld [vmem:[%s0 + $0x30] sm:$0xff]
    %v67 = vld [vmem:[%s0 + $0x38] sm:$0xff]
    %v68 = vld [vmem:[%s1] sm:$0xff]
    %v69 = vld [vmem:[%s1 + $0x8] sm:$0xf]
    %v70 = vld [vmem:[%s3] sm:$0x7]
    %v72 = vlaneseq
    %v73 = vshrl.u32 %v72, 7
    %v74 = vsub.s32 0, %v73
    %v75 = vrot.slane %v70, %v74
    %v76 = vlaneseq
    %v77 = vshrl.u32 %v76, 7
    %v78 = vsub.s32 1, %v77
    %v79 = vrot.slane %v70, %v78
    %v80 = vlaneseq
    %v81 = vshrl.u32 %v80, 7
    %v82 = vsub.s32 2, %v81
    %v83 = vrot.slane %v70, %v82
    %v89 = vcombine.high %v68, %v68
    %vm90 = vcmask 31744
    %v92 = vsel %vm90, %v60, 0
    %v95 = vsel %vm90, %v61, 0
    %v98 = vsel %vm90, %v62, 0
    %v101 = vsel %vm90, %v63, 0
    %v104 = vsel %vm90, %v64, 0
    %v107 = vsel %vm90, %v65, 0
    %v110 = vsel %vm90, %v66, 0
    %v113 = vsel %vm90, %v67, 0
    %vm115 = vcmask 1043456
    %v116 = vsel %vm115, %v68, 0
    %v118 = vsel %vm115, %v89, 0
    %v120 = vsel %vm115, %v69, 0
    %122 = vmatprep.subr.mxu0 0.0
    %123 = vmatpush1.msra.mxu0 0.0
    %124 = vmatprep.subr.mxu0 0.0
    %125 = vmatpush1.msra.mxu0 0.0
    %126 = vmatprep.subr.mxu0 0.0
    %127 = vmatpush1.msra.mxu0 0.0
    %128 = vmatprep.subr.mxu0 0.0
    %129 = vmatpush1.msra.mxu0 0.0
    %130 = vmatprep.subr.mxu0 0.0
    %131 = vmatpush1.msra.mxu0 0.0
    %132 = vmatprep.subr.mxu0 0.0
    %133 = vmatpush1.msra.mxu0 0.0
    %134 = vmatprep.subr.mxu0 0.0
    %135 = vmatpush1.msra.mxu0 0.0
    %136 = vmatprep.subr.mxu0 0.0
    %137 = vmatpush1.msra.mxu0 0.0
    %138 = vmatprep.subr.mxu0 0.0
    %139 = vmatpush1.msra.mxu0 0.0
    %140 = vmatprep.subr.mxu0 0.0
    %141 = vmatpush1.msra.mxu0 0.0
    %142 = vmatprep.subr.mxu0 0.0
    %143 = vmatpush1.msra.mxu0 0.0
    %144 = vmatprep.subr.mxu0 0.0
    %145 = vmatpush1.msra.mxu0 0.0
    %146 = vmatprep.subr.mxu0 0.0
    %147 = vmatpush1.msra.mxu0 0.0
    %148 = vmatprep.subr.mxu0 0.0
    %149 = vmatpush1.msra.mxu0 0.0
    %150 = vmatprep.subr.mxu0 0.0
    %151 = vmatpush1.msra.mxu0 0.0
    %152 = vmatprep.subr.mxu0 %v118
    %153 = vmatpush1.msra.mxu0 %v116
    %154 = vmatprep.subr.mxu0 0.0
    %155 = vmatpush2.msra.mxu0 0.0
    %156 = vmatprep.subr.mxu0 0.0
    %157 = vmatpush2.msra.mxu0 0.0
    %158 = vmatprep.subr.mxu0 0.0
    %159 = vmatpush2.msra.mxu0 0.0
    %160 = vmatprep.subr.mxu0 0.0
    %161 = vmatpush2.msra.mxu0 0.0
    %162 = vmatprep.subr.mxu0 0.0
    %163 = vmatpush2.msra.mxu0 0.0
    %164 = vmatprep.subr.mxu0 0.0
    %165 = vmatpush2.msra.mxu0 0.0
    %166 = vmatprep.subr.mxu0 0.0
    %167 = vmatpush2.msra.mxu0 0.0
    %168 = vmatprep.subr.mxu0 0.0
    %169 = vmatpush2.msra.mxu0 0.0
    %170 = vmatprep.subr.mxu0 0.0
    %171 = vmatpush2.msra.mxu0 0.0
    %172 = vmatprep.subr.mxu0 0.0
    %173 = vmatpush2.msra.mxu0 0.0
    %174 = vmatprep.subr.mxu0 0.0
    %175 = vmatpush2.msra.mxu0 0.0
    %176 = vmatprep.subr.mxu0 0.0
    %177 = vmatpush2.msra.mxu0 0.0
    %178 = vmatprep.subr.mxu0 0.0
    %179 = vmatpush2.msra.mxu0 0.0
    %180 = vmatprep.subr.mxu0 0.0
    %181 = vmatpush2.msra.mxu0 0.0
    %182 = vmatprep.subr.mxu0 0.0
    %183 = vmatpush2.msra.mxu0 0.0
    %184 = vmatprep.subr.mxu0 0.0
    %185 = vmatpush2.msra.mxu0 0.0
    %186 = vmatprep.mubr.f32.mxu0 0.0
    %187 = vmatmul.mubr.f32.gmra.mxu0 %v92
    %v188 = vpop.f32.mrf.mxu0
    %v189 = vadd.f32 %v75, %v188
    %v190 = vpop.f32.mrf.mxu0
    %v191 = vadd.f32 %v79, %v190
    %192 = vmatprep.mubr.f32.mxu0 0.0
    %193 = vmatmul.mubr.f32.gmra.mxu0 %v95
    %v194 = vpop.f32.mrf.mxu0
    %v195 = vadd.f32 %v75, %v194
    %v196 = vpop.f32.mrf.mxu0
    %v197 = vadd.f32 %v79, %v196
    %198 = vmatprep.mubr.f32.mxu0 0.0
    %199 = vmatmul.mubr.f32.gmra.mxu0 %v98
    %v200 = vpop.f32.mrf.mxu0
    %v201 = vadd.f32 %v75, %v200
    %v202 = vpop.f32.mrf.mxu0
    %v203 = vadd.f32 %v79, %v202
    %204 = vmatprep.mubr.f32.mxu0 0.0
    %205 = vmatmul.mubr.f32.gmra.mxu0 %v101
    %v206 = vpop.f32.mrf.mxu0
    %v207 = vadd.f32 %v75, %v206
    %v208 = vpop.f32.mrf.mxu0
    %v209 = vadd.f32 %v79, %v208
    %210 = vmatprep.mubr.f32.mxu0 0.0
    %211 = vmatmul.mubr.f32.gmra.mxu0 %v104
    %v212 = vpop.f32.mrf.mxu0
    %v213 = vadd.f32 %v75, %v212
    %v214 = vpop.f32.mrf.mxu0
    %v215 = vadd.f32 %v79, %v214
    %216 = vmatprep.mubr.f32.mxu0 0.0
    %217 = vmatmul.mubr.f32.gmra.mxu0 %v107
    %v218 = vpop.f32.mrf.mxu0
    %v219 = vadd.f32 %v75, %v218
    %v220 = vpop.f32.mrf.mxu0
    %v221 = vadd.f32 %v79, %v220
    %222 = vmatprep.mubr.f32.mxu0 0.0
    %223 = vmatmul.mubr.f32.gmra.mxu0 %v110
    %v224 = vpop.f32.mrf.mxu0
    %v225 = vadd.f32 %v75, %v224
    %v226 = vpop.f32.mrf.mxu0
    %v227 = vadd.f32 %v79, %v226
    %228 = vmatprep.mubr.f32.mxu0 0.0
    %229 = vmatmul.mubr.f32.gmra.mxu0 %v113
    %v230 = vpop.f32.mrf.mxu0
    %v231 = vadd.f32 %v75, %v230
    %v232 = vpop.f32.mrf.mxu0
    %v233 = vadd.f32 %v79, %v232
    %234 = vdwg.mxu0
    %235 = vmatprep.subr.mxu0 0.0
    %236 = vmatpush1.msra.mxu0 0.0
    %237 = vmatprep.subr.mxu0 0.0
    %238 = vmatpush1.msra.mxu0 0.0
    %239 = vmatprep.subr.mxu0 0.0
    %240 = vmatpush1.msra.mxu0 0.0
    %241 = vmatprep.subr.mxu0 0.0
    %242 = vmatpush1.msra.mxu0 0.0
    %243 = vmatprep.subr.mxu0 0.0
    %244 = vmatpush1.msra.mxu0 0.0
    %245 = vmatprep.subr.mxu0 0.0
    %246 = vmatpush1.msra.mxu0 0.0
    %247 = vmatprep.subr.mxu0 0.0
    %248 = vmatpush1.msra.mxu0 0.0
    %249 = vmatprep.subr.mxu0 0.0
    %250 = vmatpush1.msra.mxu0 0.0
    %251 = vmatprep.subr.mxu0 0.0
    %252 = vmatpush1.msra.mxu0 0.0
    %253 = vmatprep.subr.mxu0 0.0
    %254 = vmatpush1.msra.mxu0 0.0
    %255 = vmatprep.subr.mxu0 0.0
    %256 = vmatpush1.msra.mxu0 0.0
    %257 = vmatprep.subr.mxu0 0.0
    %258 = vmatpush1.msra.mxu0 0.0
    %259 = vmatprep.subr.mxu0 0.0
    %260 = vmatpush1.msra.mxu0 0.0
    %261 = vmatprep.subr.mxu0 0.0
    %262 = vmatpush1.msra.mxu0 0.0
    %263 = vmatprep.subr.mxu0 0.0
    %264 = vmatpush1.msra.mxu0 0.0
    %265 = vmatprep.subr.mxu0 0.0
    %266 = vmatpush1.msra.mxu0 %v120
    %267 = vmatprep.subr.mxu0 0.0
    %268 = vmatpush2.msra.mxu0 0.0
    %269 = vmatprep.subr.mxu0 0.0
    %270 = vmatpush2.msra.mxu0 0.0
    %271 = vmatprep.subr.mxu0 0.0
    %272 = vmatpush2.msra.mxu0 0.0
    %273 = vmatprep.subr.mxu0 0.0
    %274 = vmatpush2.msra.mxu0 0.0
    %275 = vmatprep.subr.mxu0 0.0
    %276 = vmatpush2.msra.mxu0 0.0
    %277 = vmatprep.subr.mxu0 0.0
    %278 = vmatpush2.msra.mxu0 0.0
    %279 = vmatprep.subr.mxu0 0.0
    %280 = vmatpush2.msra.mxu0 0.0
    %281 = vmatprep.subr.mxu0 0.0
    %282 = vmatpush2.msra.mxu0 0.0
    %283 = vmatprep.subr.mxu0 0.0
    %284 = vmatpush2.msra.mxu0 0.0
    %285 = vmatprep.subr.mxu0 0.0
    %286 = vmatpush2.msra.mxu0 0.0
    %287 = vmatprep.subr.mxu0 0.0
    %288 = vmatpush2.msra.mxu0 0.0
    %289 = vmatprep.subr.mxu0 0.0
    %290 = vmatpush2.msra.mxu0 0.0
    %291 = vmatprep.subr.mxu0 0.0
    %292 = vmatpush2.msra.mxu0 0.0
    %293 = vmatprep.subr.mxu0 0.0
    %294 = vmatpush2.msra.mxu0 0.0
    %295 = vmatprep.subr.mxu0 0.0
    %296 = vmatpush2.msra.mxu0 0.0
    %297 = vmatprep.subr.mxu0 0.0
    %298 = vmatpush2.msra.mxu0 0.0
    %299 = vmatprep.mubr.f32.mxu0 0.0
    %300 = vmatmul.mubr.f32.gmra.mxu0 %v92
    %v301 = vpop.f32.mrf.mxu0
    %v302 = vadd.f32 %v83, %v301
    %v303 = vpop.f32.mrf.mxu0
    %304 = vmatprep.mubr.f32.mxu0 0.0
    %305 = vmatmul.mubr.f32.gmra.mxu0 %v95
    %v306 = vpop.f32.mrf.mxu0
    %v307 = vadd.f32 %v83, %v306
    %v308 = vpop.f32.mrf.mxu0
    %309 = vmatprep.mubr.f32.mxu0 0.0
    %310 = vmatmul.mubr.f32.gmra.mxu0 %v98
    %v311 = vpop.f32.mrf.mxu0
    %v312 = vadd.f32 %v83, %v311
    %v313 = vpop.f32.mrf.mxu0
    %314 = vmatprep.mubr.f32.mxu0 0.0
    %315 = vmatmul.mubr.f32.gmra.mxu0 %v101
    %v316 = vpop.f32.mrf.mxu0
    %v317 = vadd.f32 %v83, %v316
    %v318 = vpop.f32.mrf.mxu0
    %319 = vmatprep.mubr.f32.mxu0 0.0
    %320 = vmatmul.mubr.f32.gmra.mxu0 %v104
    %v321 = vpop.f32.mrf.mxu0
    %v322 = vadd.f32 %v83, %v321
    %v323 = vpop.f32.mrf.mxu0
    %324 = vmatprep.mubr.f32.mxu0 0.0
    %325 = vmatmul.mubr.f32.gmra.mxu0 %v107
    %v326 = vpop.f32.mrf.mxu0
    %v327 = vadd.f32 %v83, %v326
    %v328 = vpop.f32.mrf.mxu0
    %329 = vmatprep.mubr.f32.mxu0 0.0
    %330 = vmatmul.mubr.f32.gmra.mxu0 %v110
    %v331 = vpop.f32.mrf.mxu0
    %v332 = vadd.f32 %v83, %v331
    %v333 = vpop.f32.mrf.mxu0
    %334 = vmatprep.mubr.f32.mxu0 0.0
    %335 = vmatmul.mubr.f32.gmra.mxu0 %v113
    %v336 = vpop.f32.mrf.mxu0
    %v337 = vadd.f32 %v83, %v336
    %v338 = vpop.f32.mrf.mxu0
    %339 = vdwg.mxu0
    %340 = vst [vmem:[#allocation2] sm:$0xff] %v189
    %341 = vst [vmem:[#allocation2 + $0x8] sm:$0xff] %v191
    %342 = vst [vmem:[#allocation2 + $0x10] sm:$0xff] %v302
    %343 = vst [vmem:[#allocation2 + $0x18] sm:$0xff] %v195
    %344 = vst [vmem:[#allocation2 + $0x20] sm:$0xff] %v197
    %345 = vst [vmem:[#allocation2 + $0x28] sm:$0xff] %v307
    %346 = vst [vmem:[#allocation2 + $0x30] sm:$0xff] %v201
    %347 = vst [vmem:[#allocation2 + $0x38] sm:$0xff] %v203
    %348 = vst [vmem:[#allocation2 + $0x40] sm:$0xff] %v312
    %349 = vst [vmem:[#allocation2 + $0x48] sm:$0xff] %v207
    %350 = vst [vmem:[#allocation2 + $0x50] sm:$0xff] %v209
    %351 = vst [vmem:[#allocation2 + $0x58] sm:$0xff] %v317
    %352 = vst [vmem:[#allocation2 + $0x60] sm:$0xff] %v213
    %353 = vst [vmem:[#allocation2 + $0x68] sm:$0xff] %v215
    %354 = vst [vmem:[#allocation2 + $0x70] sm:$0xff] %v322
    %355 = vst [vmem:[#allocation2 + $0x78] sm:$0xff] %v219
    %356 = vst [vmem:[#allocation2 + $0x80] sm:$0xff] %v221
    %357 = vst [vmem:[#allocation2 + $0x88] sm:$0xff] %v327
    %358 = vst [vmem:[#allocation2 + $0x90] sm:$0xff] %v225
    %359 = vst [vmem:[#allocation2 + $0x98] sm:$0xff] %v227
    %360 = vst [vmem:[#allocation2 + $0xa0] sm:$0xff] %v332
    %361 = vst [vmem:[#allocation2 + $0xa8] sm:$0xff] %v231
    %362 = vst [vmem:[#allocation2 + $0xb0] sm:$0xff] %v233
    %363 = vst [vmem:[#allocation2 + $0xb8] sm:$0xff] %v337
    %v364 = vld [vmem:[#allocation4] sm:$0xff]
    %v365 = vld [vmem:[#allocation4 + $0x8] sm:$0xff]
    %v366 = vld [vmem:[#allocation4 + $0x10] sm:$0xff]
    %v367 = vld [vmem:[#allocation4 + $0x18] sm:$0xff]
    %v368 = vld [vmem:[#allocation4 + $0x20] sm:$0xff]
    %v369 = vld [vmem:[#allocation4 + $0x28] sm:$0xff]
    %v370 = vld [vmem:[#allocation4 + $0x30] sm:$0xff]
    %v371 = vld [vmem:[#allocation4 + $0x38] sm:$0xff]
    %v372 = vld [vmem:[#allocation4 + $0x40] sm:$0xff]
    %v373 = vld [vmem:[#allocation4 + $0x48] sm:$0xff]
    %v374 = vld [vmem:[#allocation4 + $0x50] sm:$0xff]
    %v375 = vld [vmem:[#allocation4 + $0x58] sm:$0xff]
    %v376 = vld [vmem:[#allocation4 + $0x60] sm:$0xff]
    %v377 = vld [vmem:[#allocation4 + $0x68] sm:$0xff]
    %v378 = vld [vmem:[#allocation4 + $0x70] sm:$0xff]
    %v379 = vld [vmem:[#allocation4 + $0x78] sm:$0xff]
    %v380 = vld [vmem:[#allocation4 + $0x80] sm:$0xff]
    %v381 = vld [vmem:[#allocation4 + $0x88] sm:$0xff]
    %v382 = vld [vmem:[#allocation4 + $0x90] sm:$0xff]
    %v383 = vld [vmem:[#allocation4 + $0x98] sm:$0xff]
    %v384 = vld [vmem:[#allocation4 + $0xa0] sm:$0xff]
    %v385 = vld [vmem:[#allocation4 + $0xa8] sm:$0xff]
    %v386 = vld [vmem:[#allocation4 + $0xb0] sm:$0xff]
    %v387 = vld [vmem:[#allocation4 + $0xb8] sm:$0xff]
    %v388 = vld [vmem:[#allocation4 + $0xc0] sm:$0xff]
    %v389 = vld [vmem:[#allocation4 + $0xc8] sm:$0xff]
    %v390 = vld [vmem:[#allocation4 + $0xd0] sm:$0xff]
    %v391 = vld [vmem:[#allocation4 + $0xd8] sm:$0xff]
    %v392 = vld [vmem:[#allocation4 + $0xe0] sm:$0xff]
    %v393 = vld [vmem:[#allocation4 + $0xe8] sm:$0xff]
    %v394 = vld [vmem:[#allocation4 + $0xf0] sm:$0xff]
    %v395 = vld [vmem:[#allocation4 + $0xf8] sm:$0xff]
    %v396 = vld [vmem:[#allocation4 + $0x100] sm:$0xff]
    %v397 = vld [vmem:[#allocation4 + $0x108] sm:$0xff]
    %v398 = vld [vmem:[#allocation4 + $0x110] sm:$0xff]
    %v399 = vld [vmem:[#allocation4 + $0x118] sm:$0xff]
    %v400 = vld [vmem:[#allocation4 + $0x120] sm:$0xff]
    %v401 = vld [vmem:[#allocation4 + $0x128] sm:$0xff]
    %v402 = vld [vmem:[#allocation4 + $0x130] sm:$0xff]
    %v403 = vld [vmem:[#allocation4 + $0x138] sm:$0xff]
    %v404 = vld [vmem:[#allocation4 + $0x140] sm:$0xff]
    %v405 = vld [vmem:[#allocation4 + $0x148] sm:$0xff]
    %v406 = vld [vmem:[#allocation4 + $0x150] sm:$0xff]
    %v407 = vld [vmem:[#allocation4 + $0x158] sm:$0xff]
    %v408 = vld [vmem:[#allocation4 + $0x160] sm:$0xff]
    %v409 = vld [vmem:[#allocation4 + $0x168] sm:$0xff]
    %v410 = vld [vmem:[#allocation4 + $0x170] sm:$0xff]
    %v411 = vld [vmem:[#allocation4 + $0x178] sm:$0xff]
    %v412 = vld [vmem:[%s4] sm:$0x1]
    %v414 = vlaneseq
    %v415 = vshrl.u32 %v414, 7
    %v416 = vsub.s32 0, %v415
    %v417 = vrot.slane %v412, %v416
    %v419 = vld [vmem:[#allocation3] sm:$0xff]
    %v420 = vld [vmem:[#allocation2] sm:$0xff]
    %v421 = vld [vmem:[#allocation2 + $0x8] sm:$0xff]
    %v422 = vld [vmem:[#allocation2 + $0x10] sm:$0xff]
    %423 = vmatprep.subr.mxu0 %v410
    %424 = vmatpush1.msra.mxu0 %v409
    %425 = vmatprep.subr.mxu0 %v407
    %426 = vmatpush1.msra.mxu0 %v406
    %427 = vmatprep.subr.mxu0 %v404
    %428 = vmatpush1.msra.mxu0 %v403
    %429 = vmatprep.subr.mxu0 %v401
    %430 = vmatpush1.msra.mxu0 %v400
    %431 = vmatprep.subr.mxu0 %v398
    %432 = vmatpush1.msra.mxu0 %v397
    %433 = vmatprep.subr.mxu0 %v395
    %434 = vmatpush1.msra.mxu0 %v394
    %435 = vmatprep.subr.mxu0 %v392
    %436 = vmatpush1.msra.mxu0 %v391
    %437 = vmatprep.subr.mxu0 %v389
    %438 = vmatpush1.msra.mxu0 %v388
    %439 = vmatprep.subr.mxu0 %v386
    %440 = vmatpush1.msra.mxu0 %v385
    %441 = vmatprep.subr.mxu0 %v383
    %442 = vmatpush1.msra.mxu0 %v382
    %443 = vmatprep.subr.mxu0 %v380
    %444 = vmatpush1.msra.mxu0 %v379
    %445 = vmatprep.subr.mxu0 %v377
    %446 = vmatpush1.msra.mxu0 %v376
    %447 = vmatprep.subr.mxu0 %v374
    %448 = vmatpush1.msra.mxu0 %v373
    %449 = vmatprep.subr.mxu0 %v371
    %450 = vmatpush1.msra.mxu0 %v370
    %451 = vmatprep.subr.mxu0 %v368
    %452 = vmatpush1.msra.mxu0 %v367
    %453 = vmatprep.subr.mxu0 %v365
    %454 = vmatpush1.msra.mxu0 %v364
    %455 = vmatprep.subr.mxu0 0.0
    %456 = vmatpush2.msra.mxu0 0.0
    %457 = vmatprep.subr.mxu0 0.0
    %458 = vmatpush2.msra.mxu0 0.0
    %459 = vmatprep.subr.mxu0 0.0
    %460 = vmatpush2.msra.mxu0 0.0
    %461 = vmatprep.subr.mxu0 0.0
    %462 = vmatpush2.msra.mxu0 0.0
    %463 = vmatprep.subr.mxu0 0.0
    %464 = vmatpush2.msra.mxu0 0.0
    %465 = vmatprep.subr.mxu0 0.0
    %466 = vmatpush2.msra.mxu0 0.0
    %467 = vmatprep.subr.mxu0 0.0
    %468 = vmatpush2.msra.mxu0 0.0
    %469 = vmatprep.subr.mxu0 0.0
    %470 = vmatpush2.msra.mxu0 0.0
    %471 = vmatprep.subr.mxu0 0.0
    %472 = vmatpush2.msra.mxu0 0.0
    %473 = vmatprep.subr.mxu0 0.0
    %474 = vmatpush2.msra.mxu0 0.0
    %475 = vmatprep.subr.mxu0 0.0
    %476 = vmatpush2.msra.mxu0 0.0
    %477 = vmatprep.subr.mxu0 0.0
    %478 = vmatpush2.msra.mxu0 0.0
    %479 = vmatprep.subr.mxu0 0.0
    %480 = vmatpush2.msra.mxu0 0.0
    %481 = vmatprep.subr.mxu0 0.0
    %482 = vmatpush2.msra.mxu0 0.0
    %483 = vmatprep.subr.mxu0 0.0
    %484 = vmatpush2.msra.mxu0 0.0
    %485 = vmatprep.subr.mxu0 0.0
    %486 = vmatpush2.msra.mxu0 0.0
    %487 = vmatprep.mubr.f32.mxu0 0.0
    %488 = vmatmul.mubr.f32.gmra.mxu0 %v419
    %v489 = vpop.f32.mrf.mxu0
    %v490 = vadd.f32 0.0, %v489
    %v491 = vpop.f32.mrf.mxu0
    %v492 = vadd.f32 0.0, %v491
    %493 = vdwg.mxu0
    %494 = vmatprep.subr.mxu0 0.0
    %495 = vmatpush1.msra.mxu0 %v411
    %496 = vmatprep.subr.mxu0 0.0
    %497 = vmatpush1.msra.mxu0 %v408
    %498 = vmatprep.subr.mxu0 0.0
    %499 = vmatpush1.msra.mxu0 %v405
    %500 = vmatprep.subr.mxu0 0.0
    %501 = vmatpush1.msra.mxu0 %v402
    %502 = vmatprep.subr.mxu0 0.0
    %503 = vmatpush1.msra.mxu0 %v399
    %504 = vmatprep.subr.mxu0 0.0
    %505 = vmatpush1.msra.mxu0 %v396
    %506 = vmatprep.subr.mxu0 0.0
    %507 = vmatpush1.msra.mxu0 %v393
    %508 = vmatprep.subr.mxu0 0.0
    %509 = vmatpush1.msra.mxu0 %v390
    %510 = vmatprep.subr.mxu0 0.0
    %511 = vmatpush1.msra.mxu0 %v387
    %512 = vmatprep.subr.mxu0 0.0
    %513 = vmatpush1.msra.mxu0 %v384
    %514 = vmatprep.subr.mxu0 0.0
    %515 = vmatpush1.msra.mxu0 %v381
    %516 = vmatprep.subr.mxu0 0.0
    %517 = vmatpush1.msra.mxu0 %v378
    %518 = vmatprep.subr.mxu0 0.0
    %519 = vmatpush1.msra.mxu0 %v375
    %520 = vmatprep.subr.mxu0 0.0
    %521 = vmatpush1.msra.mxu0 %v372
    %522 = vmatprep.subr.mxu0 0.0
    %523 = vmatpush1.msra.mxu0 %v369
    %524 = vmatprep.subr.mxu0 0.0
    %525 = vmatpush1.msra.mxu0 %v366
    %526 = vmatprep.subr.mxu0 0.0
    %527 = vmatpush2.msra.mxu0 0.0
    %528 = vmatprep.subr.mxu0 0.0
    %529 = vmatpush2.msra.mxu0 0.0
    %530 = vmatprep.subr.mxu0 0.0
    %531 = vmatpush2.msra.mxu0 0.0
    %532 = vmatprep.subr.mxu0 0.0
    %533 = vmatpush2.msra.mxu0 0.0
    %534 = vmatprep.subr.mxu0 0.0
    %535 = vmatpush2.msra.mxu0 0.0
    %536 = vmatprep.subr.mxu0 0.0
    %537 = vmatpush2.msra.mxu0 0.0
    %538 = vmatprep.subr.mxu0 0.0
    %539 = vmatpush2.msra.mxu0 0.0
    %540 = vmatprep.subr.mxu0 0.0
    %541 = vmatpush2.msra.mxu0 0.0
    %542 = vmatprep.subr.mxu0 0.0
    %543 = vmatpush2.msra.mxu0 0.0
    %544 = vmatprep.subr.mxu0 0.0
    %545 = vmatpush2.msra.mxu0 0.0
    %546 = vmatprep.subr.mxu0 0.0
    %547 = vmatpush2.msra.mxu0 0.0
    %548 = vmatprep.subr.mxu0 0.0
    %549 = vmatpush2.msra.mxu0 0.0
    %550 = vmatprep.subr.mxu0 0.0
    %551 = vmatpush2.msra.mxu0 0.0
    %552 = vmatprep.subr.mxu0 0.0
    %553 = vmatpush2.msra.mxu0 0.0
    %554 = vmatprep.subr.mxu0 0.0
    %555 = vmatpush2.msra.mxu0 0.0
    %556 = vmatprep.subr.mxu0 0.0
    %557 = vmatpush2.msra.mxu0 0.0
    %558 = vmatprep.mubr.f32.mxu0 0.0
    %559 = vmatmul.mubr.f32.gmra.mxu0 %v419
    %v560 = vpop.f32.mrf.mxu0
    %v561 = vadd.f32 0.0, %v560
    %v562 = vpop.f32.mrf.mxu0
    %563 = vdwg.mxu0
    %v564 = vadd.f32 %v420, %v490
    %v565 = vxor.u32 %v564, 2147483648
    %v566 = vmul.f32 %v565, 1.442695
    %v567 = vpow.pop %v566
    %v568 = vadd.f32 %v567, 1.0
    %v569 = vrcp.pop %v568
    %v570 = vmul.f32 1.0, %v569
    %v571 = vadd.f32 %v421, %v492
    %v572 = vxor.u32 %v571, 2147483648
    %v573 = vmul.f32 %v572, 1.442695
    %v574 = vpow.pop %v573
    %v575 = vadd.f32 %v574, 1.0
    %v576 = vrcp.pop %v575
    %v577 = vmul.f32 1.0, %v576
    %v578 = vadd.f32 %v561, %v417
    %v579 = vmul.f32 %v570, %v578
    %v580 = vadd.f32 %v422, %v579
    %v581 = vtanh.pop %v580
    %v582 = vsub.f32 %v419, %v581
    %v583 = vmul.f32 %v577, %v582
    %v584 = vadd.f32 %v581, %v583
    %s585 = scalar_lea.vmem [#allocation2], 24
    %v586 = vld [vmem:[%s585] sm:$0xff]
    %v587 = vld [vmem:[%s585 + $0x8] sm:$0xff]
    %v588 = vld [vmem:[%s585 + $0x10] sm:$0xff]
    %589 = vmatprep.subr.mxu0 %v410
    %590 = vmatpush1.msra.mxu0 %v409
    %591 = vmatprep.subr.mxu0 %v407
    %592 = vmatpush1.msra.mxu0 %v406
    %593 = vmatprep.subr.mxu0 %v404
    %594 = vmatpush1.msra.mxu0 %v403
    %595 = vmatprep.subr.mxu0 %v401
    %596 = vmatpush1.msra.mxu0 %v400
    %597 = vmatprep.subr.mxu0 %v398
    %598 = vmatpush1.msra.mxu0 %v397
    %599 = vmatprep.subr.mxu0 %v395
    %600 = vmatpush1.msra.mxu0 %v394
    %601 = vmatprep.subr.mxu0 %v392
    %602 = vmatpush1.msra.mxu0 %v391
    %603 = vmatprep.subr.mxu0 %v389
    %604 = vmatpush1.msra.mxu0 %v388
    %605 = vmatprep.subr.mxu0 %v386
    %606 = vmatpush1.msra.mxu0 %v385
    %607 = vmatprep.subr.mxu0 %v383
    %608 = vmatpush1.msra.mxu0 %v382
    %609 = vmatprep.subr.mxu0 %v380
    %610 = vmatpush1.msra.mxu0 %v379
    %611 = vmatprep.subr.mxu0 %v377
    %612 = vmatpush1.msra.mxu0 %v376
    %613 = vmatprep.subr.mxu0 %v374
    %614 = vmatpush1.msra.mxu0 %v373
    %615 = vmatprep.subr.mxu0 %v371
    %616 = vmatpush1.msra.mxu0 %v370
    %617 = vmatprep.subr.mxu0 %v368
    %618 = vmatpush1.msra.mxu0 %v367
    %619 = vmatprep.subr.mxu0 %v365
    %620 = vmatpush1.msra.mxu0 %v364
    %621 = vmatprep.subr.mxu0 0.0
    %622 = vmatpush2.msra.mxu0 0.0
    %623 = vmatprep.subr.mxu0 0.0
    %624 = vmatpush2.msra.mxu0 0.0
    %625 = vmatprep.subr.mxu0 0.0
    %626 = vmatpush2.msra.mxu0 0.0
    %627 = vmatprep.subr.mxu0 0.0
    %628 = vmatpush2.msra.mxu0 0.0
    %629 = vmatprep.subr.mxu0 0.0
    %630 = vmatpush2.msra.mxu0 0.0
    %631 = vmatprep.subr.mxu0 0.0
    %632 = vmatpush2.msra.mxu0 0.0
    %633 = vmatprep.subr.mxu0 0.0
    %634 = vmatpush2.msra.mxu0 0.0
    %635 = vmatprep.subr.mxu0 0.0
    %636 = vmatpush2.msra.mxu0 0.0
    %637 = vmatprep.subr.mxu0 0.0
    %638 = vmatpush2.msra.mxu0 0.0
    %639 = vmatprep.subr.mxu0 0.0
    %640 = vmatpush2.msra.mxu0 0.0
    %641 = vmatprep.subr.mxu0 0.0
    %642 = vmatpush2.msra.mxu0 0.0
    %643 = vmatprep.subr.mxu0 0.0
    %644 = vmatpush2.msra.mxu0 0.0
    %645 = vmatprep.subr.mxu0 0.0
    %646 = vmatpush2.msra.mxu0 0.0
    %647 = vmatprep.subr.mxu0 0.0
    %648 = vmatpush2.msra.mxu0 0.0
    %649 = vmatprep.subr.mxu0 0.0
    %650 = vmatpush2.msra.mxu0 0.0
    %651 = vmatprep.subr.mxu0 0.0
    %652 = vmatpush2.msra.mxu0 0.0
    %653 = vmatprep.mubr.f32.mxu0 0.0
    %654 = vmatmul.mubr.f32.gmra.mxu0 %v584
    %v655 = vpop.f32.mrf.mxu0
    %v656 = vadd.f32 0.0, %v655
    %v657 = vpop.f32.mrf.mxu0
    %v658 = vadd.f32 0.0, %v657
    %659 = vdwg.mxu0
    %660 = vmatprep.subr.mxu0 0.0
    %661 = vmatpush1.msra.mxu0 %v411
    %662 = vmatprep.subr.mxu0 0.0
    %663 = vmatpush1.msra.mxu0 %v408
    %664 = vmatprep.subr.mxu0 0.0
    %665 = vmatpush1.msra.mxu0 %v405
    %666 = vmatprep.subr.mxu0 0.0
    %667 = vmatpush1.msra.mxu0 %v402
    %668 = vmatprep.subr.mxu0 0.0
    %669 = vmatpush1.msra.mxu0 %v399
    %670 = vmatprep.subr.mxu0 0.0
    %671 = vmatpush1.msra.mxu0 %v396
    %672 = vmatprep.subr.mxu0 0.0
    %673 = vmatpush1.msra.mxu0 %v393
    %674 = vmatprep.subr.mxu0 0.0
    %675 = vmatpush1.msra.mxu0 %v390
    %676 = vmatprep.subr.mxu0 0.0
    %677 = vmatpush1.msra.mxu0 %v387
    %678 = vmatprep.subr.mxu0 0.0
    %679 = vmatpush1.msra.mxu0 %v384
    %680 = vmatprep.subr.mxu0 0.0
    %681 = vmatpush1.msra.mxu0 %v381
    %682 = vmatprep.subr.mxu0 0.0
    %683 = vmatpush1.msra.mxu0 %v378
    %684 = vmatprep.subr.mxu0 0.0
    %685 = vmatpush1.msra.mxu0 %v375
    %686 = vmatprep.subr.mxu0 0.0
    %687 = vmatpush1.msra.mxu0 %v372
    %688 = vmatprep.subr.mxu0 0.0
    %689 = vmatpush1.msra.mxu0 %v369
    %690 = vmatprep.subr.mxu0 0.0
    %691 = vmatpush1.msra.mxu0 %v366
    %692 = vmatprep.subr.mxu0 0.0
    %693 = vmatpush2.msra.mxu0 0.0
    %694 = vmatprep.subr.mxu0 0.0
    %695 = vmatpush2.msra.mxu0 0.0
    %696 = vmatprep.subr.mxu0 0.0
    %697 = vmatpush2.msra.mxu0 0.0
    %698 = vmatprep.subr.mxu0 0.0
    %699 = vmatpush2.msra.mxu0 0.0
    %700 = vmatprep.subr.mxu0 0.0
    %701 = vmatpush2.msra.mxu0 0.0
    %702 = vmatprep.subr.mxu0 0.0
    %703 = vmatpush2.msra.mxu0 0.0
    %704 = vmatprep.subr.mxu0 0.0
    %705 = vmatpush2.msra.mxu0 0.0
    %706 = vmatprep.subr.mxu0 0.0
    %707 = vmatpush2.msra.mxu0 0.0
    %708 = vmatprep.subr.mxu0 0.0
    %709 = vmatpush2.msra.mxu0 0.0
    %710 = vmatprep.subr.mxu0 0.0
    %711 = vmatpush2.msra.mxu0 0.0
    %712 = vmatprep.subr.mxu0 0.0
    %713 = vmatpush2.msra.mxu0 0.0
    %714 = vmatprep.subr.mxu0 0.0
    %715 = vmatpush2.msra.mxu0 0.0
    %716 = vmatprep.subr.mxu0 0.0
    %717 = vmatpush2.msra.mxu0 0.0
    %718 = vmatprep.subr.mxu0 0.0
    %719 = vmatpush2.msra.mxu0 0.0
    %720 = vmatprep.subr.mxu0 0.0
    %721 = vmatpush2.msra.mxu0 0.0
    %722 = vmatprep.subr.mxu0 0.0
    %723 = vmatpush2.msra.mxu0 0.0
    %724 = vmatprep.mubr.f32.mxu0 0.0
    %725 = vmatmul.mubr.f32.gmra.mxu0 %v584
    %v726 = vpop.f32.mrf.mxu0
    %v727 = vadd.f32 0.0, %v726
    %v728 = vpop.f32.mrf.mxu0
    %729 = vdwg.mxu0
    %v730 = vadd.f32 %v586, %v656
    %v731 = vxor.u32 %v730, 2147483648
    %v732 = vmul.f32 %v731, 1.442695
    %v733 = vpow.pop %v732
    %v734 = vadd.f32 %v733, 1.0
    %v735 = vrcp.pop %v734
    %v736 = vmul.f32 1.0, %v735
    %v737 = vadd.f32 %v587, %v658
    %v738 = vxor.u32 %v737, 2147483648
    %v739 = vmul.f32 %v738, 1.442695
    %v740 = vpow.pop %v739
    %v741 = vadd.f32 %v740, 1.0
    %v742 = vrcp.pop %v741
    %v743 = vmul.f32 1.0, %v742
    %v744 = vadd.f32 %v727, %v417
    %v745 = vmul.f32 %v736, %v744
    %v746 = vadd.f32 %v588, %v745
    %v747 = vtanh.pop %v746
    %v748 = vsub.f32 %v584, %v747
    %v749 = vmul.f32 %v743, %v748
    %v750 = vadd.f32 %v747, %v749
    %s751 = scalar_lea.vmem [#allocation2], 48
    %v752 = vld [vmem:[%s751] sm:$0xff]
    %v753 = vld [vmem:[%s751 + $0x8] sm:$0xff]
    %v754 = vld [vmem:[%s751 + $0x10] sm:$0xff]
    %755 = vmatprep.subr.mxu0 %v410
    %756 = vmatpush1.msra.mxu0 %v409
    %757 = vmatprep.subr.mxu0 %v407
    %758 = vmatpush1.msra.mxu0 %v406
    %759 = vmatprep.subr.mxu0 %v404
    %760 = vmatpush1.msra.mxu0 %v403
    %761 = vmatprep.subr.mxu0 %v401
    %762 = vmatpush1.msra.mxu0 %v400
    %763 = vmatprep.subr.mxu0 %v398
    %764 = vmatpush1.msra.mxu0 %v397
    %765 = vmatprep.subr.mxu0 %v395
    %766 = vmatpush1.msra.mxu0 %v394
    %767 = vmatprep.subr.mxu0 %v392
    %768 = vmatpush1.msra.mxu0 %v391
    %769 = vmatprep.subr.mxu0 %v389
    %770 = vmatpush1.msra.mxu0 %v388
    %771 = vmatprep.subr.mxu0 %v386
    %772 = vmatpush1.msra.mxu0 %v385
    %773 = vmatprep.subr.mxu0 %v383
    %774 = vmatpush1.msra.mxu0 %v382
    %775 = vmatprep.subr.mxu0 %v380
    %776 = vmatpush1.msra.mxu0 %v379
    %777 = vmatprep.subr.mxu0 %v377
    %778 = vmatpush1.msra.mxu0 %v376
    %779 = vmatprep.subr.mxu0 %v374
    %780 = vmatpush1.msra.mxu0 %v373
    %781 = vmatprep.subr.mxu0 %v371
    %782 = vmatpush1.msra.mxu0 %v370
    %783 = vmatprep.subr.mxu0 %v368
    %784 = vmatpush1.msra.mxu0 %v367
    %785 = vmatprep.subr.mxu0 %v365
    %786 = vmatpush1.msra.mxu0 %v364
    %787 = vmatprep.subr.mxu0 0.0
    %788 = vmatpush2.msra.mxu0 0.0
    %789 = vmatprep.subr.mxu0 0.0
    %790 = vmatpush2.msra.mxu0 0.0
    %791 = vmatprep.subr.mxu0 0.0
    %792 = vmatpush2.msra.mxu0 0.0
    %793 = vmatprep.subr.mxu0 0.0
    %794 = vmatpush2.msra.mxu0 0.0
    %795 = vmatprep.subr.mxu0 0.0
    %796 = vmatpush2.msra.mxu0 0.0
    %797 = vmatprep.subr.mxu0 0.0
    %798 = vmatpush2.msra.mxu0 0.0
    %799 = vmatprep.subr.mxu0 0.0
    %800 = vmatpush2.msra.mxu0 0.0
    %801 = vmatprep.subr.mxu0 0.0
    %802 = vmatpush2.msra.mxu0 0.0
    %803 = vmatprep.subr.mxu0 0.0
    %804 = vmatpush2.msra.mxu0 0.0
    %805 = vmatprep.subr.mxu0 0.0
    %806 = vmatpush2.msra.mxu0 0.0
    %807 = vmatprep.subr.mxu0 0.0
    %808 = vmatpush2.msra.mxu0 0.0
    %809 = vmatprep.subr.mxu0 0.0
    %810 = vmatpush2.msra.mxu0 0.0
    %811 = vmatprep.subr.mxu0 0.0
    %812 = vmatpush2.msra.mxu0 0.0
    %813 = vmatprep.subr.mxu0 0.0
    %814 = vmatpush2.msra.mxu0 0.0
    %815 = vmatprep.subr.mxu0 0.0
    %816 = vmatpush2.msra.mxu0 0.0
    %817 = vmatprep.subr.mxu0 0.0
    %818 = vmatpush2.msra.mxu0 0.0
    %819 = vmatprep.mubr.f32.mxu0 0.0
    %820 = vmatmul.mubr.f32.gmra.mxu0 %v750
    %v821 = vpop.f32.mrf.mxu0
    %v822 = vadd.f32 0.0, %v821
    %v823 = vpop.f32.mrf.mxu0
    %v824 = vadd.f32 0.0, %v823
    %825 = vdwg.mxu0
    %826 = vmatprep.subr.mxu0 0.0
    %827 = vmatpush1.msra.mxu0 %v411
    %828 = vmatprep.subr.mxu0 0.0
    %829 = vmatpush1.msra.mxu0 %v408
    %830 = vmatprep.subr.mxu0 0.0
    %831 = vmatpush1.msra.mxu0 %v405
    %832 = vmatprep.subr.mxu0 0.0
    %833 = vmatpush1.msra.mxu0 %v402
    %834 = vmatprep.subr.mxu0 0.0
    %835 = vmatpush1.msra.mxu0 %v399
    %836 = vmatprep.subr.mxu0 0.0
    %837 = vmatpush1.msra.mxu0 %v396
    %838 = vmatprep.subr.mxu0 0.0
    %839 = vmatpush1.msra.mxu0 %v393
    %840 = vmatprep.subr.mxu0 0.0
    %841 = vmatpush1.msra.mxu0 %v390
    %842 = vmatprep.subr.mxu0 0.0
    %843 = vmatpush1.msra.mxu0 %v387
    %844 = vmatprep.subr.mxu0 0.0
    %845 = vmatpush1.msra.mxu0 %v384
    %846 = vmatprep.subr.mxu0 0.0
    %847 = vmatpush1.msra.mxu0 %v381
    %848 = vmatprep.subr.mxu0 0.0
    %849 = vmatpush1.msra.mxu0 %v378
    %850 = vmatprep.subr.mxu0 0.0
    %851 = vmatpush1.msra.mxu0 %v375
    %852 = vmatprep.subr.mxu0 0.0
    %853 = vmatpush1.msra.mxu0 %v372
    %854 = vmatprep.subr.mxu0 0.0
    %855 = vmatpush1.msra.mxu0 %v369
    %856 = vmatprep.subr.mxu0 0.0
    %857 = vmatpush1.msra.mxu0 %v366
    %858 = vmatprep.subr.mxu0 0.0
    %859 = vmatpush2.msra.mxu0 0.0
    %860 = vmatprep.subr.mxu0 0.0
    %861 = vmatpush2.msra.mxu0 0.0
    %862 = vmatprep.subr.mxu0 0.0
    %863 = vmatpush2.msra.mxu0 0.0
    %864 = vmatprep.subr.mxu0 0.0
    %865 = vmatpush2.msra.mxu0 0.0
    %866 = vmatprep.subr.mxu0 0.0
    %867 = vmatpush2.msra.mxu0 0.0
    %868 = vmatprep.subr.mxu0 0.0
    %869 = vmatpush2.msra.mxu0 0.0
    %870 = vmatprep.subr.mxu0 0.0
    %871 = vmatpush2.msra.mxu0 0.0
    %872 = vmatprep.subr.mxu0 0.0
    %873 = vmatpush2.msra.mxu0 0.0
    %874 = vmatprep.subr.mxu0 0.0
    %875 = vmatpush2.msra.mxu0 0.0
    %876 = vmatprep.subr.mxu0 0.0
    %877 = vmatpush2.msra.mxu0 0.0
    %878 = vmatprep.subr.mxu0 0.0
    %879 = vmatpush2.msra.mxu0 0.0
    %880 = vmatprep.subr.mxu0 0.0
    %881 = vmatpush2.msra.mxu0 0.0
    %882 = vmatprep.subr.mxu0 0.0
    %883 = vmatpush2.msra.mxu0 0.0
    %884 = vmatprep.subr.mxu0 0.0
    %885 = vmatpush2.msra.mxu0 0.0
    %886 = vmatprep.subr.mxu0 0.0
    %887 = vmatpush2.msra.mxu0 0.0
    %888 = vmatprep.subr.mxu0 0.0
    %889 = vmatpush2.msra.mxu0 0.0
    %890 = vmatprep.mubr.f32.mxu0 0.0
    %891 = vmatmul.mubr.f32.gmra.mxu0 %v750
    %v892 = vpop.f32.mrf.mxu0
    %v893 = vadd.f32 0.0, %v892
    %v894 = vpop.f32.mrf.mxu0
    %895 = vdwg.mxu0
    %v896 = vadd.f32 %v752, %v822
    %v897 = vxor.u32 %v896, 2147483648
    %v898 = vmul.f32 %v897, 1.442695
    %v899 = vpow.pop %v898
    %v900 = vadd.f32 %v899, 1.0
    %v901 = vrcp.pop %v900
    %v902 = vmul.f32 1.0, %v901
    %v903 = vadd.f32 %v753, %v824
    %v904 = vxor.u32 %v903, 2147483648
    %v905 = vmul.f32 %v904, 1.442695
    %v906 = vpow.pop %v905
    %v907 = vadd.f32 %v906, 1.0
    %v908 = vrcp.pop %v907
    %v909 = vmul.f32 1.0, %v908
    %v910 = vadd.f32 %v893, %v417
    %v911 = vmul.f32 %v902, %v910
    %v912 = vadd.f32 %v754, %v911
    %v913 = vtanh.pop %v912
    %v914 = vsub.f32 %v750, %v913
    %v915 = vmul.f32 %v909, %v914
    %v916 = vadd.f32 %v913, %v915
    %s917 = scalar_lea.vmem [#allocation2], 72
    %v918 = vld [vmem:[%s917] sm:$0xff]
    %v919 = vld [vmem:[%s917 + $0x8] sm:$0xff]
    %v920 = vld [vmem:[%s917 + $0x10] sm:$0xff]
    %921 = vmatprep.subr.mxu0 %v410
    %922 = vmatpush1.msra.mxu0 %v409
    %923 = vmatprep.subr.mxu0 %v407
    %924 = vmatpush1.msra.mxu0 %v406
    %925 = vmatprep.subr.mxu0 %v404
    %926 = vmatpush1.msra.mxu0 %v403
    %927 = vmatprep.subr.mxu0 %v401
    %928 = vmatpush1.msra.mxu0 %v400
    %929 = vmatprep.subr.mxu0 %v398
    %930 = vmatpush1.msra.mxu0 %v397
    %931 = vmatprep.subr.mxu0 %v395
    %932 = vmatpush1.msra.mxu0 %v394
    %933 = vmatprep.subr.mxu0 %v392
    %934 = vmatpush1.msra.mxu0 %v391
    %935 = vmatprep.subr.mxu0 %v389
    %936 = vmatpush1.msra.mxu0 %v388
    %937 = vmatprep.subr.mxu0 %v386
    %938 = vmatpush1.msra.mxu0 %v385
    %939 = vmatprep.subr.mxu0 %v383
    %940 = vmatpush1.msra.mxu0 %v382
    %941 = vmatprep.subr.mxu0 %v380
    %942 = vmatpush1.msra.mxu0 %v379
    %943 = vmatprep.subr.mxu0 %v377
    %944 = vmatpush1.msra.mxu0 %v376
    %945 = vmatprep.subr.mxu0 %v374
    %946 = vmatpush1.msra.mxu0 %v373
    %947 = vmatprep.subr.mxu0 %v371
    %948 = vmatpush1.msra.mxu0 %v370
    %949 = vmatprep.subr.mxu0 %v368
    %950 = vmatpush1.msra.mxu0 %v367
    %951 = vmatprep.subr.mxu0 %v365
    %952 = vmatpush1.msra.mxu0 %v364
    %953 = vmatprep.subr.mxu0 0.0
    %954 = vmatpush2.msra.mxu0 0.0
    %955 = vmatprep.subr.mxu0 0.0
    %956 = vmatpush2.msra.mxu0 0.0
    %957 = vmatprep.subr.mxu0 0.0
    %958 = vmatpush2.msra.mxu0 0.0
    %959 = vmatprep.subr.mxu0 0.0
    %960 = vmatpush2.msra.mxu0 0.0
    %961 = vmatprep.subr.mxu0 0.0
    %962 = vmatpush2.msra.mxu0 0.0
    %963 = vmatprep.subr.mxu0 0.0
    %964 = vmatpush2.msra.mxu0 0.0
    %965 = vmatprep.subr.mxu0 0.0
    %966 = vmatpush2.msra.mxu0 0.0
    %967 = vmatprep.subr.mxu0 0.0
    %968 = vmatpush2.msra.mxu0 0.0
    %969 = vmatprep.subr.mxu0 0.0
    %970 = vmatpush2.msra.mxu0 0.0
    %971 = vmatprep.subr.mxu0 0.0
    %972 = vmatpush2.msra.mxu0 0.0
    %973 = vmatprep.subr.mxu0 0.0
    %974 = vmatpush2.msra.mxu0 0.0
    %975 = vmatprep.subr.mxu0 0.0
    %976 = vmatpush2.msra.mxu0 0.0
    %977 = vmatprep.subr.mxu0 0.0
    %978 = vmatpush2.msra.mxu0 0.0
    %979 = vmatprep.subr.mxu0 0.0
    %980 = vmatpush2.msra.mxu0 0.0
    %981 = vmatprep.subr.mxu0 0.0
    %982 = vmatpush2.msra.mxu0 0.0
    %983 = vmatprep.subr.mxu0 0.0
    %984 = vmatpush2.msra.mxu0 0.0
    %985 = vmatprep.mubr.f32.mxu0 0.0
    %986 = vmatmul.mubr.f32.gmra.mxu0 %v916
    %v987 = vpop.f32.mrf.mxu0
    %v988 = vadd.f32 0.0, %v987
    %v989 = vpop.f32.mrf.mxu0
    %v990 = vadd.f32 0.0, %v989
    %991 = vdwg.mxu0
    %992 = vmatprep.subr.mxu0 0.0
    %993 = vmatpush1.msra.mxu0 %v411
    %994 = vmatprep.subr.mxu0 0.0
    %995 = vmatpush1.msra.mxu0 %v408
    %996 = vmatprep.subr.mxu0 0.0
    %997 = vmatpush1.msra.mxu0 %v405
    %998 = vmatprep.subr.mxu0 0.0
    %999 = vmatpush1.msra.mxu0 %v402
    %1000 = vmatprep.subr.mxu0 0.0
    %1001 = vmatpush1.msra.mxu0 %v399
    %1002 = vmatprep.subr.mxu0 0.0
    %1003 = vmatpush1.msra.mxu0 %v396
    %1004 = vmatprep.subr.mxu0 0.0
    %1005 = vmatpush1.msra.mxu0 %v393
    %1006 = vmatprep.subr.mxu0 0.0
    %1007 = vmatpush1.msra.mxu0 %v390
    %1008 = vmatprep.subr.mxu0 0.0
    %1009 = vmatpush1.msra.mxu0 %v387
    %1010 = vmatprep.subr.mxu0 0.0
    %1011 = vmatpush1.msra.mxu0 %v384
    %1012 = vmatprep.subr.mxu0 0.0
    %1013 = vmatpush1.msra.mxu0 %v381
    %1014 = vmatprep.subr.mxu0 0.0
    %1015 = vmatpush1.msra.mxu0 %v378
    %1016 = vmatprep.subr.mxu0 0.0
    %1017 = vmatpush1.msra.mxu0 %v375
    %1018 = vmatprep.subr.mxu0 0.0
    %1019 = vmatpush1.msra.mxu0 %v372
    %1020 = vmatprep.subr.mxu0 0.0
    %1021 = vmatpush1.msra.mxu0 %v369
    %1022 = vmatprep.subr.mxu0 0.0
    %1023 = vmatpush1.msra.mxu0 %v366
    %1024 = vmatprep.subr.mxu0 0.0
    %1025 = vmatpush2.msra.mxu0 0.0
    %1026 = vmatprep.subr.mxu0 0.0
    %1027 = vmatpush2.msra.mxu0 0.0
    %1028 = vmatprep.subr.mxu0 0.0
    %1029 = vmatpush2.msra.mxu0 0.0
    %1030 = vmatprep.subr.mxu0 0.0
    %1031 = vmatpush2.msra.mxu0 0.0
    %1032 = vmatprep.subr.mxu0 0.0
    %1033 = vmatpush2.msra.mxu0 0.0
    %1034 = vmatprep.subr.mxu0 0.0
    %1035 = vmatpush2.msra.mxu0 0.0
    %1036 = vmatprep.subr.mxu0 0.0
    %1037 = vmatpush2.msra.mxu0 0.0
    %1038 = vmatprep.subr.mxu0 0.0
    %1039 = vmatpush2.msra.mxu0 0.0
    %1040 = vmatprep.subr.mxu0 0.0
    %1041 = vmatpush2.msra.mxu0 0.0
    %1042 = vmatprep.subr.mxu0 0.0
    %1043 = vmatpush2.msra.mxu0 0.0
    %1044 = vmatprep.subr.mxu0 0.0
    %1045 = vmatpush2.msra.mxu0 0.0
    %1046 = vmatprep.subr.mxu0 0.0
    %1047 = vmatpush2.msra.mxu0 0.0
    %1048 = vmatprep.subr.mxu0 0.0
    %1049 = vmatpush2.msra.mxu0 0.0
    %1050 = vmatprep.subr.mxu0 0.0
    %1051 = vmatpush2.msra.mxu0 0.0
    %1052 = vmatprep.subr.mxu0 0.0
    %1053 = vmatpush2.msra.mxu0 0.0
    %1054 = vmatprep.subr.mxu0 0.0
    %1055 = vmatpush2.msra.mxu0 0.0
    %1056 = vmatprep.mubr.f32.mxu0 0.0
    %1057 = vmatmul.mubr.f32.gmra.mxu0 %v916
    %v1058 = vpop.f32.mrf.mxu0
    %v1059 = vadd.f32 0.0, %v1058
    %v1060 = vpop.f32.mrf.mxu0
    %1061 = vdwg.mxu0
    %v1062 = vadd.f32 %v918, %v988
    %v1063 = vxor.u32 %v1062, 2147483648
    %v1064 = vmul.f32 %v1063, 1.442695
    %v1065 = vpow.pop %v1064
    %v1066 = vadd.f32 %v1065, 1.0
    %v1067 = vrcp.pop %v1066
    %v1068 = vmul.f32 1.0, %v1067
    %v1069 = vadd.f32 %v919, %v990
    %v1070 = vxor.u32 %v1069, 2147483648
    %v1071 = vmul.f32 %v1070, 1.442695
    %v1072 = vpow.pop %v1071
    %v1073 = vadd.f32 %v1072, 1.0
    %v1074 = vrcp.pop %v1073
    %v1075 = vmul.f32 1.0, %v1074
    %v1076 = vadd.f32 %v1059, %v417
    %v1077 = vmul.f32 %v1068, %v1076
    %v1078 = vadd.f32 %v920, %v1077
    %v1079 = vtanh.pop %v1078
    %v1080 = vsub.f32 %v916, %v1079
    %v1081 = vmul.f32 %v1075, %v1080
    %v1082 = vadd.f32 %v1079, %v1081
    %s1083 = scalar_lea.vmem [#allocation2], 96
    %v1084 = vld [vmem:[%s1083] sm:$0xff]
    %v1085 = vld [vmem:[%s1083 + $0x8] sm:$0xff]
    %v1086 = vld [vmem:[%s1083 + $0x10] sm:$0xff]
    %1087 = vmatprep.subr.mxu0 %v410
    %1088 = vmatpush1.msra.mxu0 %v409
    %1089 = vmatprep.subr.mxu0 %v407
    %1090 = vmatpush1.msra.mxu0 %v406
    %1091 = vmatprep.subr.mxu0 %v404
    %1092 = vmatpush1.msra.mxu0 %v403
    %1093 = vmatprep.subr.mxu0 %v401
    %1094 = vmatpush1.msra.mxu0 %v400
    %1095 = vmatprep.subr.mxu0 %v398
    %1096 = vmatpush1.msra.mxu0 %v397
    %1097 = vmatprep.subr.mxu0 %v395
    %1098 = vmatpush1.msra.mxu0 %v394
    %1099 = vmatprep.subr.mxu0 %v392
    %1100 = vmatpush1.msra.mxu0 %v391
    %1101 = vmatprep.subr.mxu0 %v389
    %1102 = vmatpush1.msra.mxu0 %v388
    %1103 = vmatprep.subr.mxu0 %v386
    %1104 = vmatpush1.msra.mxu0 %v385
    %1105 = vmatprep.subr.mxu0 %v383
    %1106 = vmatpush1.msra.mxu0 %v382
    %1107 = vmatprep.subr.mxu0 %v380
    %1108 = vmatpush1.msra.mxu0 %v379
    %1109 = vmatprep.subr.mxu0 %v377
    %1110 = vmatpush1.msra.mxu0 %v376
    %1111 = vmatprep.subr.mxu0 %v374
    %1112 = vmatpush1.msra.mxu0 %v373
    %1113 = vmatprep.subr.mxu0 %v371
    %1114 = vmatpush1.msra.mxu0 %v370
    %1115 = vmatprep.subr.mxu0 %v368
    %1116 = vmatpush1.msra.mxu0 %v367
    %1117 = vmatprep.subr.mxu0 %v365
    %1118 = vmatpush1.msra.mxu0 %v364
    %1119 = vmatprep.subr.mxu0 0.0
    %1120 = vmatpush2.msra.mxu0 0.0
    %1121 = vmatprep.subr.mxu0 0.0
    %1122 = vmatpush2.msra.mxu0 0.0
    %1123 = vmatprep.subr.mxu0 0.0
    %1124 = vmatpush2.msra.mxu0 0.0
    %1125 = vmatprep.subr.mxu0 0.0
    %1126 = vmatpush2.msra.mxu0 0.0
    %1127 = vmatprep.subr.mxu0 0.0
    %1128 = vmatpush2.msra.mxu0 0.0
    %1129 = vmatprep.subr.mxu0 0.0
    %1130 = vmatpush2.msra.mxu0 0.0
    %1131 = vmatprep.subr.mxu0 0.0
    %1132 = vmatpush2.msra.mxu0 0.0
    %1133 = vmatprep.subr.mxu0 0.0
    %1134 = vmatpush2.msra.mxu0 0.0
    %1135 = vmatprep.subr.mxu0 0.0
    %1136 = vmatpush2.msra.mxu0 0.0
    %1137 = vmatprep.subr.mxu0 0.0
    %1138 = vmatpush2.msra.mxu0 0.0
    %1139 = vmatprep.subr.mxu0 0.0
    %1140 = vmatpush2.msra.mxu0 0.0
    %1141 = vmatprep.subr.mxu0 0.0
    %1142 = vmatpush2.msra.mxu0 0.0
    %1143 = vmatprep.subr.mxu0 0.0
    %1144 = vmatpush2.msra.mxu0 0.0
    %1145 = vmatprep.subr.mxu0 0.0
    %1146 = vmatpush2.msra.mxu0 0.0
    %1147 = vmatprep.subr.mxu0 0.0
    %1148 = vmatpush2.msra.mxu0 0.0
    %1149 = vmatprep.subr.mxu0 0.0
    %1150 = vmatpush2.msra.mxu0 0.0
    %1151 = vmatprep.mubr.f32.mxu0 0.0
    %1152 = vmatmul.mubr.f32.gmra.mxu0 %v1082
    %v1153 = vpop.f32.mrf.mxu0
    %v1154 = vadd.f32 0.0, %v1153
    %v1155 = vpop.f32.mrf.mxu0
    %v1156 = vadd.f32 0.0, %v1155
    %1157 = vdwg.mxu0
    %1158 = vmatprep.subr.mxu0 0.0
    %1159 = vmatpush1.msra.mxu0 %v411
    %1160 = vmatprep.subr.mxu0 0.0
    %1161 = vmatpush1.msra.mxu0 %v408
    %1162 = vmatprep.subr.mxu0 0.0
    %1163 = vmatpush1.msra.mxu0 %v405
    %1164 = vmatprep.subr.mxu0 0.0
    %1165 = vmatpush1.msra.mxu0 %v402
    %1166 = vmatprep.subr.mxu0 0.0
    %1167 = vmatpush1.msra.mxu0 %v399
    %1168 = vmatprep.subr.mxu0 0.0
    %1169 = vmatpush1.msra.mxu0 %v396
    %1170 = vmatprep.subr.mxu0 0.0
    %1171 = vmatpush1.msra.mxu0 %v393
    %1172 = vmatprep.subr.mxu0 0.0
    %1173 = vmatpush1.msra.mxu0 %v390
    %1174 = vmatprep.subr.mxu0 0.0
    %1175 = vmatpush1.msra.mxu0 %v387
    %1176 = vmatprep.subr.mxu0 0.0
    %1177 = vmatpush1.msra.mxu0 %v384
    %1178 = vmatprep.subr.mxu0 0.0
    %1179 = vmatpush1.msra.mxu0 %v381
    %1180 = vmatprep.subr.mxu0 0.0
    %1181 = vmatpush1.msra.mxu0 %v378
    %1182 = vmatprep.subr.mxu0 0.0
    %1183 = vmatpush1.msra.mxu0 %v375
    %1184 = vmatprep.subr.mxu0 0.0
    %1185 = vmatpush1.msra.mxu0 %v372
    %1186 = vmatprep.subr.mxu0 0.0
    %1187 = vmatpush1.msra.mxu0 %v369
    %1188 = vmatprep.subr.mxu0 0.0
    %1189 = vmatpush1.msra.mxu0 %v366
    %1190 = vmatprep.subr.mxu0 0.0
    %1191 = vmatpush2.msra.mxu0 0.0
    %1192 = vmatprep.subr.mxu0 0.0
    %1193 = vmatpush2.msra.mxu0 0.0
    %1194 = vmatprep.subr.mxu0 0.0
    %1195 = vmatpush2.msra.mxu0 0.0
    %1196 = vmatprep.subr.mxu0 0.0
    %1197 = vmatpush2.msra.mxu0 0.0
    %1198 = vmatprep.subr.mxu0 0.0
    %1199 = vmatpush2.msra.mxu0 0.0
    %1200 = vmatprep.subr.mxu0 0.0
    %1201 = vmatpush2.msra.mxu0 0.0
    %1202 = vmatprep.subr.mxu0 0.0
    %1203 = vmatpush2.msra.mxu0 0.0
    %1204 = vmatprep.subr.mxu0 0.0
    %1205 = vmatpush2.msra.mxu0 0.0
    %1206 = vmatprep.subr.mxu0 0.0
    %1207 = vmatpush2.msra.mxu0 0.0
    %1208 = vmatprep.subr.mxu0 0.0
    %1209 = vmatpush2.msra.mxu0 0.0
    %1210 = vmatprep.subr.mxu0 0.0
    %1211 = vmatpush2.msra.mxu0 0.0
    %1212 = vmatprep.subr.mxu0 0.0
    %1213 = vmatpush2.msra.mxu0 0.0
    %1214 = vmatprep.subr.mxu0 0.0
    %1215 = vmatpush2.msra.mxu0 0.0
    %1216 = vmatprep.subr.mxu0 0.0
    %1217 = vmatpush2.msra.mxu0 0.0
    %1218 = vmatprep.subr.mxu0 0.0
    %1219 = vmatpush2.msra.mxu0 0.0
    %1220 = vmatprep.subr.mxu0 0.0
    %1221 = vmatpush2.msra.mxu0 0.0
    %1222 = vmatprep.mubr.f32.mxu0 0.0
    %1223 = vmatmul.mubr.f32.gmra.mxu0 %v1082
    %v1224 = vpop.f32.mrf.mxu0
    %v1225 = vadd.f32 0.0, %v1224
    %v1226 = vpop.f32.mrf.mxu0
    %1227 = vdwg.mxu0
    %v1228 = vadd.f32 %v1084, %v1154
    %v1229 = vxor.u32 %v1228, 2147483648
    %v1230 = vmul.f32 %v1229, 1.442695
    %v1231 = vpow.pop %v1230
    %v1232 = vadd.f32 %v1231, 1.0
    %v1233 = vrcp.pop %v1232
    %v1234 = vmul.f32 1.0, %v1233
    %v1235 = vadd.f32 %v1085, %v1156
    %v1236 = vxor.u32 %v1235, 2147483648
    %v1237 = vmul.f32 %v1236, 1.442695
    %v1238 = vpow.pop %v1237
    %v1239 = vadd.f32 %v1238, 1.0
    %v1240 = vrcp.pop %v1239
    %v1241 = vmul.f32 1.0, %v1240
    %v1242 = vadd.f32 %v1225, %v417
    %v1243 = vmul.f32 %v1234, %v1242
    %v1244 = vadd.f32 %v1086, %v1243
    %v1245 = vtanh.pop %v1244
    %v1246 = vsub.f32 %v1082, %v1245
    %v1247 = vmul.f32 %v1241, %v1246
    %v1248 = vadd.f32 %v1245, %v1247
    %s1249 = scalar_lea.vmem [#allocation2], 120
    %v1250 = vld [vmem:[%s1249] sm:$0xff]
    %v1251 = vld [vmem:[%s1249 + $0x8] sm:$0xff]
    %v1252 = vld [vmem:[%s1249 + $0x10] sm:$0xff]
    %1253 = vmatprep.subr.mxu0 %v410
    %1254 = vmatpush1.msra.mxu0 %v409
    %1255 = vmatprep.subr.mxu0 %v407
    %1256 = vmatpush1.msra.mxu0 %v406
    %1257 = vmatprep.subr.mxu0 %v404
    %1258 = vmatpush1.msra.mxu0 %v403
    %1259 = vmatprep.subr.mxu0 %v401
    %1260 = vmatpush1.msra.mxu0 %v400
    %1261 = vmatprep.subr.mxu0 %v398
    %1262 = vmatpush1.msra.mxu0 %v397
    %1263 = vmatprep.subr.mxu0 %v395
    %1264 = vmatpush1.msra.mxu0 %v394
    %1265 = vmatprep.subr.mxu0 %v392
    %1266 = vmatpush1.msra.mxu0 %v391
    %1267 = vmatprep.subr.mxu0 %v389
    %1268 = vmatpush1.msra.mxu0 %v388
    %1269 = vmatprep.subr.mxu0 %v386
    %1270 = vmatpush1.msra.mxu0 %v385
    %1271 = vmatprep.subr.mxu0 %v383
    %1272 = vmatpush1.msra.mxu0 %v382
    %1273 = vmatprep.subr.mxu0 %v380
    %1274 = vmatpush1.msra.mxu0 %v379
    %1275 = vmatprep.subr.mxu0 %v377
    %1276 = vmatpush1.msra.mxu0 %v376
    %1277 = vmatprep.subr.mxu0 %v374
    %1278 = vmatpush1.msra.mxu0 %v373
    %1279 = vmatprep.subr.mxu0 %v371
    %1280 = vmatpush1.msra.mxu0 %v370
    %1281 = vmatprep.subr.mxu0 %v368
    %1282 = vmatpush1.msra.mxu0 %v367
    %1283 = vmatprep.subr.mxu0 %v365
    %1284 = vmatpush1.msra.mxu0 %v364
    %1285 = vmatprep.subr.mxu0 0.0
    %1286 = vmatpush2.msra.mxu0 0.0
    %1287 = vmatprep.subr.mxu0 0.0
    %1288 = vmatpush2.msra.mxu0 0.0
    %1289 = vmatprep.subr.mxu0 0.0
    %1290 = vmatpush2.msra.mxu0 0.0
    %1291 = vmatprep.subr.mxu0 0.0
    %1292 = vmatpush2.msra.mxu0 0.0
    %1293 = vmatprep.subr.mxu0 0.0
    %1294 = vmatpush2.msra.mxu0 0.0
    %1295 = vmatprep.subr.mxu0 0.0
    %1296 = vmatpush2.msra.mxu0 0.0
    %1297 = vmatprep.subr.mxu0 0.0
    %1298 = vmatpush2.msra.mxu0 0.0
    %1299 = vmatprep.subr.mxu0 0.0
    %1300 = vmatpush2.msra.mxu0 0.0
    %1301 = vmatprep.subr.mxu0 0.0
    %1302 = vmatpush2.msra.mxu0 0.0
    %1303 = vmatprep.subr.mxu0 0.0
    %1304 = vmatpush2.msra.mxu0 0.0
    %1305 = vmatprep.subr.mxu0 0.0
    %1306 = vmatpush2.msra.mxu0 0.0
    %1307 = vmatprep.subr.mxu0 0.0
    %1308 = vmatpush2.msra.mxu0 0.0
    %1309 = vmatprep.subr.mxu0 0.0
    %1310 = vmatpush2.msra.mxu0 0.0
    %1311 = vmatprep.subr.mxu0 0.0
    %1312 = vmatpush2.msra.mxu0 0.0
    %1313 = vmatprep.subr.mxu0 0.0
    %1314 = vmatpush2.msra.mxu0 0.0
    %1315 = vmatprep.subr.mxu0 0.0
    %1316 = vmatpush2.msra.mxu0 0.0
    %1317 = vmatprep.mubr.f32.mxu0 0.0
    %1318 = vmatmul.mubr.f32.gmra.mxu0 %v1248
    %v1319 = vpop.f32.mrf.mxu0
    %v1320 = vadd.f32 0.0, %v1319
    %v1321 = vpop.f32.mrf.mxu0
    %v1322 = vadd.f32 0.0, %v1321
    %1323 = vdwg.mxu0
    %1324 = vmatprep.subr.mxu0 0.0
    %1325 = vmatpush1.msra.mxu0 %v411
    %1326 = vmatprep.subr.mxu0 0.0
    %1327 = vmatpush1.msra.mxu0 %v408
    %1328 = vmatprep.subr.mxu0 0.0
    %1329 = vmatpush1.msra.mxu0 %v405
    %1330 = vmatprep.subr.mxu0 0.0
    %1331 = vmatpush1.msra.mxu0 %v402
    %1332 = vmatprep.subr.mxu0 0.0
    %1333 = vmatpush1.msra.mxu0 %v399
    %1334 = vmatprep.subr.mxu0 0.0
    %1335 = vmatpush1.msra.mxu0 %v396
    %1336 = vmatprep.subr.mxu0 0.0
    %1337 = vmatpush1.msra.mxu0 %v393
    %1338 = vmatprep.subr.mxu0 0.0
    %1339 = vmatpush1.msra.mxu0 %v390
    %1340 = vmatprep.subr.mxu0 0.0
    %1341 = vmatpush1.msra.mxu0 %v387
    %1342 = vmatprep.subr.mxu0 0.0
    %1343 = vmatpush1.msra.mxu0 %v384
    %1344 = vmatprep.subr.mxu0 0.0
    %1345 = vmatpush1.msra.mxu0 %v381
    %1346 = vmatprep.subr.mxu0 0.0
    %1347 = vmatpush1.msra.mxu0 %v378
    %1348 = vmatprep.subr.mxu0 0.0
    %1349 = vmatpush1.msra.mxu0 %v375
    %1350 = vmatprep.subr.mxu0 0.0
    %1351 = vmatpush1.msra.mxu0 %v372
    %1352 = vmatprep.subr.mxu0 0.0
    %1353 = vmatpush1.msra.mxu0 %v369
    %1354 = vmatprep.subr.mxu0 0.0
    %1355 = vmatpush1.msra.mxu0 %v366
    %1356 = vmatprep.subr.mxu0 0.0
    %1357 = vmatpush2.msra.mxu0 0.0
    %1358 = vmatprep.subr.mxu0 0.0
    %1359 = vmatpush2.msra.mxu0 0.0
    %1360 = vmatprep.subr.mxu0 0.0
    %1361 = vmatpush2.msra.mxu0 0.0
    %1362 = vmatprep.subr.mxu0 0.0
    %1363 = vmatpush2.msra.mxu0 0.0
    %1364 = vmatprep.subr.mxu0 0.0
    %1365 = vmatpush2.msra.mxu0 0.0
    %1366 = vmatprep.subr.mxu0 0.0
    %1367 = vmatpush2.msra.mxu0 0.0
    %1368 = vmatprep.subr.mxu0 0.0
    %1369 = vmatpush2.msra.mxu0 0.0
    %1370 = vmatprep.subr.mxu0 0.0
    %1371 = vmatpush2.msra.mxu0 0.0
    %1372 = vmatprep.subr.mxu0 0.0
    %1373 = vmatpush2.msra.mxu0 0.0
    %1374 = vmatprep.subr.mxu0 0.0
    %1375 = vmatpush2.msra.mxu0 0.0
    %1376 = vmatprep.subr.mxu0 0.0
    %1377 = vmatpush2.msra.mxu0 0.0
    %1378 = vmatprep.subr.mxu0 0.0
    %1379 = vmatpush2.msra.mxu0 0.0
    %1380 = vmatprep.subr.mxu0 0.0
    %1381 = vmatpush2.msra.mxu0 0.0
    %1382 = vmatprep.subr.mxu0 0.0
    %1383 = vmatpush2.msra.mxu0 0.0
    %1384 = vmatprep.subr.mxu0 0.0
    %1385 = vmatpush2.msra.mxu0 0.0
    %1386 = vmatprep.subr.mxu0 0.0
    %1387 = vmatpush2.msra.mxu0 0.0
    %1388 = vmatprep.mubr.f32.mxu0 0.0
    %1389 = vmatmul.mubr.f32.gmra.mxu0 %v1248
    %v1390 = vpop.f32.mrf.mxu0
    %v1391 = vadd.f32 0.0, %v1390
    %v1392 = vpop.f32.mrf.mxu0
    %1393 = vdwg.mxu0
    %v1394 = vadd.f32 %v1250, %v1320
    %v1395 = vxor.u32 %v1394, 2147483648
    %v1396 = vmul.f32 %v1395, 1.442695
    %v1397 = vpow.pop %v1396
    %v1398 = vadd.f32 %v1397, 1.0
    %v1399 = vrcp.pop %v1398
    %v1400 = vmul.f32 1.0, %v1399
    %v1401 = vadd.f32 %v1251, %v1322
    %v1402 = vxor.u32 %v1401, 2147483648
    %v1403 = vmul.f32 %v1402, 1.442695
    %v1404 = vpow.pop %v1403
    %v1405 = vadd.f32 %v1404, 1.0
    %v1406 = vrcp.pop %v1405
    %v1407 = vmul.f32 1.0, %v1406
    %v1408 = vadd.f32 %v1391, %v417
    %v1409 = vmul.f32 %v1400, %v1408
    %v1410 = vadd.f32 %v1252, %v1409
    %v1411 = vtanh.pop %v1410
    %v1412 = vsub.f32 %v1248, %v1411
    %v1413 = vmul.f32 %v1407, %v1412
    %v1414 = vadd.f32 %v1411, %v1413
    %s1415 = scalar_lea.vmem [#allocation2], 144
    %v1416 = vld [vmem:[%s1415] sm:$0xff]
    %v1417 = vld [vmem:[%s1415 + $0x8] sm:$0xff]
    %v1418 = vld [vmem:[%s1415 + $0x10] sm:$0xff]
    %1419 = vmatprep.subr.mxu0 %v410
    %1420 = vmatpush1.msra.mxu0 %v409
    %1421 = vmatprep.subr.mxu0 %v407
    %1422 = vmatpush1.msra.mxu0 %v406
    %1423 = vmatprep.subr.mxu0 %v404
    %1424 = vmatpush1.msra.mxu0 %v403
    %1425 = vmatprep.subr.mxu0 %v401
    %1426 = vmatpush1.msra.mxu0 %v400
    %1427 = vmatprep.subr.mxu0 %v398
    %1428 = vmatpush1.msra.mxu0 %v397
    %1429 = vmatprep.subr.mxu0 %v395
    %1430 = vmatpush1.msra.mxu0 %v394
    %1431 = vmatprep.subr.mxu0 %v392
    %1432 = vmatpush1.msra.mxu0 %v391
    %1433 = vmatprep.subr.mxu0 %v389
    %1434 = vmatpush1.msra.mxu0 %v388
    %1435 = vmatprep.subr.mxu0 %v386
    %1436 = vmatpush1.msra.mxu0 %v385
    %1437 = vmatprep.subr.mxu0 %v383
    %1438 = vmatpush1.msra.mxu0 %v382
    %1439 = vmatprep.subr.mxu0 %v380
    %1440 = vmatpush1.msra.mxu0 %v379
    %1441 = vmatprep.subr.mxu0 %v377
    %1442 = vmatpush1.msra.mxu0 %v376
    %1443 = vmatprep.subr.mxu0 %v374
    %1444 = vmatpush1.msra.mxu0 %v373
    %1445 = vmatprep.subr.mxu0 %v371
    %1446 = vmatpush1.msra.mxu0 %v370
    %1447 = vmatprep.subr.mxu0 %v368
    %1448 = vmatpush1.msra.mxu0 %v367
    %1449 = vmatprep.subr.mxu0 %v365
    %1450 = vmatpush1.msra.mxu0 %v364
    %1451 = vmatprep.subr.mxu0 0.0
    %1452 = vmatpush2.msra.mxu0 0.0
    %1453 = vmatprep.subr.mxu0 0.0
    %1454 = vmatpush2.msra.mxu0 0.0
    %1455 = vmatprep.subr.mxu0 0.0
    %1456 = vmatpush2.msra.mxu0 0.0
    %1457 = vmatprep.subr.mxu0 0.0
    %1458 = vmatpush2.msra.mxu0 0.0
    %1459 = vmatprep.subr.mxu0 0.0
    %1460 = vmatpush2.msra.mxu0 0.0
    %1461 = vmatprep.subr.mxu0 0.0
    %1462 = vmatpush2.msra.mxu0 0.0
    %1463 = vmatprep.subr.mxu0 0.0
    %1464 = vmatpush2.msra.mxu0 0.0
    %1465 = vmatprep.subr.mxu0 0.0
    %1466 = vmatpush2.msra.mxu0 0.0
    %1467 = vmatprep.subr.mxu0 0.0
    %1468 = vmatpush2.msra.mxu0 0.0
    %1469 = vmatprep.subr.mxu0 0.0
    %1470 = vmatpush2.msra.mxu0 0.0
    %1471 = vmatprep.subr.mxu0 0.0
    %1472 = vmatpush2.msra.mxu0 0.0
    %1473 = vmatprep.subr.mxu0 0.0
    %1474 = vmatpush2.msra.mxu0 0.0
    %1475 = vmatprep.subr.mxu0 0.0
    %1476 = vmatpush2.msra.mxu0 0.0
    %1477 = vmatprep.subr.mxu0 0.0
    %1478 = vmatpush2.msra.mxu0 0.0
    %1479 = vmatprep.subr.mxu0 0.0
    %1480 = vmatpush2.msra.mxu0 0.0
    %1481 = vmatprep.subr.mxu0 0.0
    %1482 = vmatpush2.msra.mxu0 0.0
    %1483 = vmatprep.mubr.f32.mxu0 0.0
    %1484 = vmatmul.mubr.f32.gmra.mxu0 %v1414
    %v1485 = vpop.f32.mrf.mxu0
    %v1486 = vadd.f32 0.0, %v1485
    %v1487 = vpop.f32.mrf.mxu0
    %v1488 = vadd.f32 0.0, %v1487
    %1489 = vdwg.mxu0
    %1490 = vmatprep.subr.mxu0 0.0
    %1491 = vmatpush1.msra.mxu0 %v411
    %1492 = vmatprep.subr.mxu0 0.0
    %1493 = vmatpush1.msra.mxu0 %v408
    %1494 = vmatprep.subr.mxu0 0.0
    %1495 = vmatpush1.msra.mxu0 %v405
    %1496 = vmatprep.subr.mxu0 0.0
    %1497 = vmatpush1.msra.mxu0 %v402
    %1498 = vmatprep.subr.mxu0 0.0
    %1499 = vmatpush1.msra.mxu0 %v399
    %1500 = vmatprep.subr.mxu0 0.0
    %1501 = vmatpush1.msra.mxu0 %v396
    %1502 = vmatprep.subr.mxu0 0.0
    %1503 = vmatpush1.msra.mxu0 %v393
    %1504 = vmatprep.subr.mxu0 0.0
    %1505 = vmatpush1.msra.mxu0 %v390
    %1506 = vmatprep.subr.mxu0 0.0
    %1507 = vmatpush1.msra.mxu0 %v387
    %1508 = vmatprep.subr.mxu0 0.0
    %1509 = vmatpush1.msra.mxu0 %v384
    %1510 = vmatprep.subr.mxu0 0.0
    %1511 = vmatpush1.msra.mxu0 %v381
    %1512 = vmatprep.subr.mxu0 0.0
    %1513 = vmatpush1.msra.mxu0 %v378
    %1514 = vmatprep.subr.mxu0 0.0
    %1515 = vmatpush1.msra.mxu0 %v375
    %1516 = vmatprep.subr.mxu0 0.0
    %1517 = vmatpush1.msra.mxu0 %v372
    %1518 = vmatprep.subr.mxu0 0.0
    %1519 = vmatpush1.msra.mxu0 %v369
    %1520 = vmatprep.subr.mxu0 0.0
    %1521 = vmatpush1.msra.mxu0 %v366
    %1522 = vmatprep.subr.mxu0 0.0
    %1523 = vmatpush2.msra.mxu0 0.0
    %1524 = vmatprep.subr.mxu0 0.0
    %1525 = vmatpush2.msra.mxu0 0.0
    %1526 = vmatprep.subr.mxu0 0.0
    %1527 = vmatpush2.msra.mxu0 0.0
    %1528 = vmatprep.subr.mxu0 0.0
    %1529 = vmatpush2.msra.mxu0 0.0
    %1530 = vmatprep.subr.mxu0 0.0
    %1531 = vmatpush2.msra.mxu0 0.0
    %1532 = vmatprep.subr.mxu0 0.0
    %1533 = vmatpush2.msra.mxu0 0.0
    %1534 = vmatprep.subr.mxu0 0.0
    %1535 = vmatpush2.msra.mxu0 0.0
    %1536 = vmatprep.subr.mxu0 0.0
    %1537 = vmatpush2.msra.mxu0 0.0
    %1538 = vmatprep.subr.mxu0 0.0
    %1539 = vmatpush2.msra.mxu0 0.0
    %1540 = vmatprep.subr.mxu0 0.0
    %1541 = vmatpush2.msra.mxu0 0.0
    %1542 = vmatprep.subr.mxu0 0.0
    %1543 = vmatpush2.msra.mxu0 0.0
    %1544 = vmatprep.subr.mxu0 0.0
    %1545 = vmatpush2.msra.mxu0 0.0
    %1546 = vmatprep.subr.mxu0 0.0
    %1547 = vmatpush2.msra.mxu0 0.0
    %1548 = vmatprep.subr.mxu0 0.0
    %1549 = vmatpush2.msra.mxu0 0.0
    %1550 = vmatprep.subr.mxu0 0.0
    %1551 = vmatpush2.msra.mxu0 0.0
    %1552 = vmatprep.subr.mxu0 0.0
    %1553 = vmatpush2.msra.mxu0 0.0
    %1554 = vmatprep.mubr.f32.mxu0 0.0
    %1555 = vmatmul.mubr.f32.gmra.mxu0 %v1414
    %v1556 = vpop.f32.mrf.mxu0
    %v1557 = vadd.f32 0.0, %v1556
    %v1558 = vpop.f32.mrf.mxu0
    %1559 = vdwg.mxu0
    %v1560 = vadd.f32 %v1416, %v1486
    %v1561 = vxor.u32 %v1560, 2147483648
    %v1562 = vmul.f32 %v1561, 1.442695
    %v1563 = vpow.pop %v1562
    %v1564 = vadd.f32 %v1563, 1.0
    %v1565 = vrcp.pop %v1564
    %v1566 = vmul.f32 1.0, %v1565
    %v1567 = vadd.f32 %v1417, %v1488
    %v1568 = vxor.u32 %v1567, 2147483648
    %v1569 = vmul.f32 %v1568, 1.442695
    %v1570 = vpow.pop %v1569
    %v1571 = vadd.f32 %v1570, 1.0
    %v1572 = vrcp.pop %v1571
    %v1573 = vmul.f32 1.0, %v1572
    %v1574 = vadd.f32 %v1557, %v417
    %v1575 = vmul.f32 %v1566, %v1574
    %v1576 = vadd.f32 %v1418, %v1575
    %v1577 = vtanh.pop %v1576
    %v1578 = vsub.f32 %v1414, %v1577
    %v1579 = vmul.f32 %v1573, %v1578
    %v1580 = vadd.f32 %v1577, %v1579
    %s1581 = scalar_lea.vmem [#allocation2], 168
    %v1582 = vld [vmem:[%s1581] sm:$0xff]
    %v1583 = vld [vmem:[%s1581 + $0x8] sm:$0xff]
    %v1584 = vld [vmem:[%s1581 + $0x10] sm:$0xff]
    %1585 = vmatprep.subr.mxu0 %v410
    %1586 = vmatpush1.msra.mxu0 %v409
    %1587 = vmatprep.subr.mxu0 %v407
    %1588 = vmatpush1.msra.mxu0 %v406
    %1589 = vmatprep.subr.mxu0 %v404
    %1590 = vmatpush1.msra.mxu0 %v403
    %1591 = vmatprep.subr.mxu0 %v401
    %1592 = vmatpush1.msra.mxu0 %v400
    %1593 = vmatprep.subr.mxu0 %v398
    %1594 = vmatpush1.msra.mxu0 %v397
    %1595 = vmatprep.subr.mxu0 %v395
    %1596 = vmatpush1.msra.mxu0 %v394
    %1597 = vmatprep.subr.mxu0 %v392
    %1598 = vmatpush1.msra.mxu0 %v391
    %1599 = vmatprep.subr.mxu0 %v389
    %1600 = vmatpush1.msra.mxu0 %v388
    %1601 = vmatprep.subr.mxu0 %v386
    %1602 = vmatpush1.msra.mxu0 %v385
    %1603 = vmatprep.subr.mxu0 %v383
    %1604 = vmatpush1.msra.mxu0 %v382
    %1605 = vmatprep.subr.mxu0 %v380
    %1606 = vmatpush1.msra.mxu0 %v379
    %1607 = vmatprep.subr.mxu0 %v377
    %1608 = vmatpush1.msra.mxu0 %v376
    %1609 = vmatprep.subr.mxu0 %v374
    %1610 = vmatpush1.msra.mxu0 %v373
    %1611 = vmatprep.subr.mxu0 %v371
    %1612 = vmatpush1.msra.mxu0 %v370
    %1613 = vmatprep.subr.mxu0 %v368
    %1614 = vmatpush1.msra.mxu0 %v367
    %1615 = vmatprep.subr.mxu0 %v365
    %1616 = vmatpush1.msra.mxu0 %v364
    %1617 = vmatprep.subr.mxu0 0.0
    %1618 = vmatpush2.msra.mxu0 0.0
    %1619 = vmatprep.subr.mxu0 0.0
    %1620 = vmatpush2.msra.mxu0 0.0
    %1621 = vmatprep.subr.mxu0 0.0
    %1622 = vmatpush2.msra.mxu0 0.0
    %1623 = vmatprep.subr.mxu0 0.0
    %1624 = vmatpush2.msra.mxu0 0.0
    %1625 = vmatprep.subr.mxu0 0.0
    %1626 = vmatpush2.msra.mxu0 0.0
    %1627 = vmatprep.subr.mxu0 0.0
    %1628 = vmatpush2.msra.mxu0 0.0
    %1629 = vmatprep.subr.mxu0 0.0
    %1630 = vmatpush2.msra.mxu0 0.0
    %1631 = vmatprep.subr.mxu0 0.0
    %1632 = vmatpush2.msra.mxu0 0.0
    %1633 = vmatprep.subr.mxu0 0.0
    %1634 = vmatpush2.msra.mxu0 0.0
    %1635 = vmatprep.subr.mxu0 0.0
    %1636 = vmatpush2.msra.mxu0 0.0
    %1637 = vmatprep.subr.mxu0 0.0
    %1638 = vmatpush2.msra.mxu0 0.0
    %1639 = vmatprep.subr.mxu0 0.0
    %1640 = vmatpush2.msra.mxu0 0.0
    %1641 = vmatprep.subr.mxu0 0.0
    %1642 = vmatpush2.msra.mxu0 0.0
    %1643 = vmatprep.subr.mxu0 0.0
    %1644 = vmatpush2.msra.mxu0 0.0
    %1645 = vmatprep.subr.mxu0 0.0
    %1646 = vmatpush2.msra.mxu0 0.0
    %1647 = vmatprep.subr.mxu0 0.0
    %1648 = vmatpush2.msra.mxu0 0.0
    %1649 = vmatprep.mubr.f32.mxu0 0.0
    %1650 = vmatmul.mubr.f32.gmra.mxu0 %v1580
    %v1651 = vpop.f32.mrf.mxu0
    %v1652 = vadd.f32 0.0, %v1651
    %v1653 = vpop.f32.mrf.mxu0
    %v1654 = vadd.f32 0.0, %v1653
    %1655 = vdwg.mxu0
    %1656 = vmatprep.subr.mxu0 0.0
    %1657 = vmatpush1.msra.mxu0 %v411
    %1658 = vmatprep.subr.mxu0 0.0
    %1659 = vmatpush1.msra.mxu0 %v408
    %1660 = vmatprep.subr.mxu0 0.0
    %1661 = vmatpush1.msra.mxu0 %v405
    %1662 = vmatprep.subr.mxu0 0.0
    %1663 = vmatpush1.msra.mxu0 %v402
    %1664 = vmatprep.subr.mxu0 0.0
    %1665 = vmatpush1.msra.mxu0 %v399
    %1666 = vmatprep.subr.mxu0 0.0
    %1667 = vmatpush1.msra.mxu0 %v396
    %1668 = vmatprep.subr.mxu0 0.0
    %1669 = vmatpush1.msra.mxu0 %v393
    %1670 = vmatprep.subr.mxu0 0.0
    %1671 = vmatpush1.msra.mxu0 %v390
    %1672 = vmatprep.subr.mxu0 0.0
    %1673 = vmatpush1.msra.mxu0 %v387
    %1674 = vmatprep.subr.mxu0 0.0
    %1675 = vmatpush1.msra.mxu0 %v384
    %1676 = vmatprep.subr.mxu0 0.0
    %1677 = vmatpush1.msra.mxu0 %v381
    %1678 = vmatprep.subr.mxu0 0.0
    %1679 = vmatpush1.msra.mxu0 %v378
    %1680 = vmatprep.subr.mxu0 0.0
    %1681 = vmatpush1.msra.mxu0 %v375
    %1682 = vmatprep.subr.mxu0 0.0
    %1683 = vmatpush1.msra.mxu0 %v372
    %1684 = vmatprep.subr.mxu0 0.0
    %1685 = vmatpush1.msra.mxu0 %v369
    %1686 = vmatprep.subr.mxu0 0.0
    %1687 = vmatpush1.msra.mxu0 %v366
    %1688 = vmatprep.subr.mxu0 0.0
    %1689 = vmatpush2.msra.mxu0 0.0
    %1690 = vmatprep.subr.mxu0 0.0
    %1691 = vmatpush2.msra.mxu0 0.0
    %1692 = vmatprep.subr.mxu0 0.0
    %1693 = vmatpush2.msra.mxu0 0.0
    %1694 = vmatprep.subr.mxu0 0.0
    %1695 = vmatpush2.msra.mxu0 0.0
    %1696 = vmatprep.subr.mxu0 0.0
    %1697 = vmatpush2.msra.mxu0 0.0
    %1698 = vmatprep.subr.mxu0 0.0
    %1699 = vmatpush2.msra.mxu0 0.0
    %1700 = vmatprep.subr.mxu0 0.0
    %1701 = vmatpush2.msra.mxu0 0.0
    %1702 = vmatprep.subr.mxu0 0.0
    %1703 = vmatpush2.msra.mxu0 0.0
    %1704 = vmatprep.subr.mxu0 0.0
    %1705 = vmatpush2.msra.mxu0 0.0
    %1706 = vmatprep.subr.mxu0 0.0
    %1707 = vmatpush2.msra.mxu0 0.0
    %1708 = vmatprep.subr.mxu0 0.0
    %1709 = vmatpush2.msra.mxu0 0.0
    %1710 = vmatprep.subr.mxu0 0.0
    %1711 = vmatpush2.msra.mxu0 0.0
    %1712 = vmatprep.subr.mxu0 0.0
    %1713 = vmatpush2.msra.mxu0 0.0
    %1714 = vmatprep.subr.mxu0 0.0
    %1715 = vmatpush2.msra.mxu0 0.0
    %1716 = vmatprep.subr.mxu0 0.0
    %1717 = vmatpush2.msra.mxu0 0.0
    %1718 = vmatprep.subr.mxu0 0.0
    %1719 = vmatpush2.msra.mxu0 0.0
    %1720 = vmatprep.mubr.f32.mxu0 0.0
    %1721 = vmatmul.mubr.f32.gmra.mxu0 %v1580
    %v1722 = vpop.f32.mrf.mxu0
    %v1723 = vadd.f32 0.0, %v1722
    %v1724 = vpop.f32.mrf.mxu0
    %1725 = vdwg.mxu0
    %v1726 = vadd.f32 %v1582, %v1652
    %v1727 = vxor.u32 %v1726, 2147483648
    %v1728 = vmul.f32 %v1727, 1.442695
    %v1729 = vpow.pop %v1728
    %v1730 = vadd.f32 %v1729, 1.0
    %v1731 = vrcp.pop %v1730
    %v1732 = vmul.f32 1.0, %v1731
    %v1733 = vadd.f32 %v1583, %v1654
    %v1734 = vxor.u32 %v1733, 2147483648
    %v1735 = vmul.f32 %v1734, 1.442695
    %v1736 = vpow.pop %v1735
    %v1737 = vadd.f32 %v1736, 1.0
    %v1738 = vrcp.pop %v1737
    %v1739 = vmul.f32 1.0, %v1738
    %v1740 = vadd.f32 %v1723, %v417
    %v1741 = vmul.f32 %v1732, %v1740
    %v1742 = vadd.f32 %v1584, %v1741
    %v1743 = vtanh.pop %v1742
    %v1744 = vsub.f32 %v1580, %v1743
    %v1745 = vmul.f32 %v1739, %v1744
    %v1746 = vadd.f32 %v1743, %v1745
    %1747 = vst [vmem:[#allocation3] sm:$0xff] %v1746
    // Predicated region
    $region42: #{tpu_custom_call.1} parent=1 // pred_check
      %p1748 = pneg %p55
    $region43: #{tpu_custom_call.1} parent=1 // pred_check_branch
      %1750 = sbr.rel (%p1748) target = $region45
    $region44: #{tpu_custom_call.1} parent=1 // pred_region
      %v1751 = vtanh.pop %v1746
      %v1752 = vld [vmem:[#allocation7] sm:$0xff]
      %v1753 = vld [vmem:[#allocation7 + $0x8] sm:$0xff]
      %v1754 = vld [vmem:[#allocation7 + $0x10] sm:$0xff]
      %v1755 = vld [vmem:[#allocation7 + $0x18] sm:$0xff]
      %v1756 = vld [vmem:[#allocation7 + $0x20] sm:$0xff]
      %v1757 = vld [vmem:[#allocation7 + $0x28] sm:$0xff]
      %v1758 = vld [vmem:[#allocation7 + $0x30] sm:$0xff]
      %v1759 = vld [vmem:[#allocation7 + $0x38] sm:$0xff]
      %v1760 = vld [vmem:[#allocation7 + $0x40] sm:$0xff]
      %v1761 = vld [vmem:[#allocation7 + $0x48] sm:$0xff]
      %v1762 = vld [vmem:[#allocation7 + $0x50] sm:$0xff]
      %v1763 = vld [vmem:[#allocation7 + $0x58] sm:$0xff]
      %v1764 = vld [vmem:[#allocation7 + $0x60] sm:$0xff]
      %v1765 = vld [vmem:[#allocation7 + $0x68] sm:$0xff]
      %v1766 = vld [vmem:[#allocation7 + $0x70] sm:$0xff]
      %v1767 = vld [vmem:[#allocation7 + $0x78] sm:$0xff]
      %v1768 = vld [vmem:[%s6] sm:$0x1]
      %v1770 = vlaneseq
      %v1771 = vshrl.u32 %v1770, 7
      %v1772 = vsub.s32 0, %v1771
      %v1773 = vrot.slane %v1768, %v1772
      %1775 = vmatprep.subr.mxu0 0.0
      %1776 = vmatpush1.msra.mxu0 %v1767
      %1777 = vmatprep.subr.mxu0 0.0
      %1778 = vmatpush1.msra.mxu0 %v1766
      %1779 = vmatprep.subr.mxu0 0.0
      %1780 = vmatpush1.msra.mxu0 %v1765
      %1781 = vmatprep.subr.mxu0 0.0
      %1782 = vmatpush1.msra.mxu0 %v1764
      %1783 = vmatprep.subr.mxu0 0.0
      %1784 = vmatpush1.msra.mxu0 %v1763
      %1785 = vmatprep.subr.mxu0 0.0
      %1786 = vmatpush1.msra.mxu0 %v1762
      %1787 = vmatprep.subr.mxu0 0.0
      %1788 = vmatpush1.msra.mxu0 %v1761
      %1789 = vmatprep.subr.mxu0 0.0
      %1790 = vmatpush1.msra.mxu0 %v1760
      %1791 = vmatprep.subr.mxu0 0.0
      %1792 = vmatpush1.msra.mxu0 %v1759
      %1793 = vmatprep.subr.mxu0 0.0
      %1794 = vmatpush1.msra.mxu0 %v1758
      %1795 = vmatprep.subr.mxu0 0.0
      %1796 = vmatpush1.msra.mxu0 %v1757
      %1797 = vmatprep.subr.mxu0 0.0
      %1798 = vmatpush1.msra.mxu0 %v1756
      %1799 = vmatprep.subr.mxu0 0.0
      %1800 = vmatpush1.msra.mxu0 %v1755
      %1801 = vmatprep.subr.mxu0 0.0
      %1802 = vmatpush1.msra.mxu0 %v1754
      %1803 = vmatprep.subr.mxu0 0.0
      %1804 = vmatpush1.msra.mxu0 %v1753
      %1805 = vmatprep.subr.mxu0 0.0
      %1806 = vmatpush1.msra.mxu0 %v1752
      %1807 = vmatprep.subr.mxu0 0.0
      %1808 = vmatpush2.msra.mxu0 0.0
      %1809 = vmatprep.subr.mxu0 0.0
      %1810 = vmatpush2.msra.mxu0 0.0
      %1811 = vmatprep.subr.mxu0 0.0
      %1812 = vmatpush2.msra.mxu0 0.0
      %1813 = vmatprep.subr.mxu0 0.0
      %1814 = vmatpush2.msra.mxu0 0.0
      %1815 = vmatprep.subr.mxu0 0.0
      %1816 = vmatpush2.msra.mxu0 0.0
      %1817 = vmatprep.subr.mxu0 0.0
      %1818 = vmatpush2.msra.mxu0 0.0
      %1819 = vmatprep.subr.mxu0 0.0
      %1820 = vmatpush2.msra.mxu0 0.0
      %1821 = vmatprep.subr.mxu0 0.0
      %1822 = vmatpush2.msra.mxu0 0.0
      %1823 = vmatprep.subr.mxu0 0.0
      %1824 = vmatpush2.msra.mxu0 0.0
      %1825 = vmatprep.subr.mxu0 0.0
      %1826 = vmatpush2.msra.mxu0 0.0
      %1827 = vmatprep.subr.mxu0 0.0
      %1828 = vmatpush2.msra.mxu0 0.0
      %1829 = vmatprep.subr.mxu0 0.0
      %1830 = vmatpush2.msra.mxu0 0.0
      %1831 = vmatprep.subr.mxu0 0.0
      %1832 = vmatpush2.msra.mxu0 0.0
      %1833 = vmatprep.subr.mxu0 0.0
      %1834 = vmatpush2.msra.mxu0 0.0
      %1835 = vmatprep.subr.mxu0 0.0
      %1836 = vmatpush2.msra.mxu0 0.0
      %1837 = vmatprep.subr.mxu0 0.0
      %1838 = vmatpush2.msra.mxu0 0.0
      %1839 = vmatprep.mubr.f32.mxu0 0.0
      %1840 = vmatmul.mubr.f32.gmra.mxu0 %v1751
      %v1841 = vpop.f32.mrf.mxu0
      %v1842 = vadd.f32 %v1773, %v1841
      %v1843 = vpop.f32.mrf.mxu0
      %1844 = vdwg.mxu0
      %1845 = vst [vmem:[#allocation9] sm:$0xff] %v1842
    $region45: #{tpu_custom_call.1} parent=1 // pred_fallthru
      _
    // Predicated region
    $region46: #{tpu_custom_call.1} parent=1 // pred_check
      _
    $region47: #{tpu_custom_call.1} parent=1 // pred_check_branch
      %1847 = sbr.rel (0) target = $region49
    $region48: #{tpu_custom_call.1} parent=1 // pred_region
      %s1849 = ssub.s32 128, 128
      %1850 = vsyncadd [#allocation6], %s1849
      %s1852 = sshll.u32 [#allocation9], 4
      %s1853 = int_to_ptr.vmem [resolvable:$true] %s1852
      %1855 = dma.vmem_to_hbm [thread:$0]  %s1853, 128, %s7, [#allocation6]
    $region49: #{tpu_custom_call.1} parent=1 // pred_fallthru
      _
    // Predicated region
    $region50: #{tpu_custom_call.1} parent=1 // pred_check
      _
    $region51: #{tpu_custom_call.1} parent=1 // pred_check_branch
      %1857 = sbr.rel (0) target = $region53
    $region52: #{tpu_custom_call.1} parent=1 // pred_region
      %1858 = dma.done [#allocation6], 128
    $region53: #{tpu_custom_call.1} parent=1 // pred_fallthru
      _
    %1859 = vsyncpa [#allocation5], 1
    %1860 = vsyncpa [#allocation8], 1
    %1861 = vsyncpa [#allocation6], 1

</llo_original>
